<compile_context>
chip_gen: v7x
topology: tpu7x:2x2x1
jax: 0.10.0
libtpu: 0.0.40
codegen_flags: <defaults>
</compile_context>

<pallas_src>
import functools

import jax
import jax.numpy as jnp
from jax.experimental import pallas as pl
from jax.experimental.pallas import tpu as pltpu


def _lstm_kernel(x_ref, wih_ref, whh_ref, b_ref, wfc_ref, bfc_ref, out_ref,
                 *, seq_len, batch_pad, hidden_size):
    T = seq_len
    Bp = batch_pad
    H = hidden_size

    # Input projection for ALL timesteps in one MXU pass (parallel over time).
    # x_ref holds the time-major, batch-padded input flattened to (T*Bp, I).
    xg_all = (
        jnp.dot(x_ref[...], wih_ref[...], preferred_element_type=jnp.float32)
        + b_ref[...]
    )  # (T*Bp, 4H) f32, biases (b_ih + b_hh) already folded in.

    h = jnp.zeros((Bp, H), jnp.float32)
    c = jnp.zeros((Bp, H), jnp.float32)

    whh = whh_ref[...]  # (H, 4H), hoisted load

    # T is small and static at trace time: a fully-unrolled Python loop gives the
    # scheduler full visibility of the recurrence chain (static indices everywhere).
    # TODO(synk): for long sequences, switch to lax.fori_loop over a VMEM scratch
    # holding xg_all to bound live ranges.
    for t in range(T):
        gates = xg_all[t * Bp:(t + 1) * Bp, :] + jnp.dot(
            h.astype(whh.dtype), whh, preferred_element_type=jnp.float32)

        # PyTorch gate order [i, f, g, o]. For H >= 128 these are whole-vreg lane
        # slices; at H=64 they are cheap sub-vreg selects on the VPU.
        i_g = jax.nn.sigmoid(gates[:, 0 * H:1 * H])
        f_g = jax.nn.sigmoid(gates[:, 1 * H:2 * H])
        g_g = jnp.tanh(gates[:, 2 * H:3 * H])
        o_g = jax.nn.sigmoid(gates[:, 3 * H:4 * H])

        c = f_g * c + i_g * g_g
        h = o_g * jnp.tanh(c)

    # FC head on the last hidden state; output padded to 128 lanes -> dense store.
    out_ref[...] = (
        jnp.dot(h.astype(wfc_ref.dtype), wfc_ref[...],
                preferred_element_type=jnp.float32)
        + bfc_ref[...]
    ).astype(out_ref.dtype)


def rnn_classifier_forward(x_btf, w_ih, w_hh, b_ih, b_hh, w_fc, b_fc,
                           compute_dtype=jnp.float32):
    """Forward pass of RNNClassifier.

    x_btf: (B, T, I) float32, PyTorch batch_first layout.
    w_ih: (4H, I), w_hh: (4H, H), b_ih/b_hh: (4H,), w_fc: (O, H), b_fc: (O,).
    compute_dtype: jnp.float32 (exact) or jnp.bfloat16 (native MXU on v6e/v7x).
    Returns: (B, O) float32 logits.
    """
    B, T, I = x_btf.shape
    H = w_hh.shape[1]
    O = w_fc.shape[0]

    B_pad = ((B + 7) // 8) * 8            # sublane alignment for MXU/vreg rows
    O_pad = ((O + 127) // 128) * 128      # lane-dense final store

    # Time-major + batch-padded, flattened so the input projection for all
    # timesteps is one matmul inside the kernel.
    x_tbf = jnp.transpose(x_btf, (1, 0, 2))                       # (T, B, I)
    x_tbf = jnp.pad(x_tbf, ((0, 0), (0, B_pad - B), (0, 0)))      # (T, B_pad, I)
    x2d = x_tbf.reshape(T * B_pad, I).astype(compute_dtype)       # (T*B_pad, I)

    wih_t = jnp.transpose(w_ih).astype(compute_dtype)             # (I, 4H)
    whh_t = jnp.transpose(w_hh).astype(compute_dtype)             # (H, 4H)
    bias = (b_ih + b_hh).reshape(1, 4 * H).astype(jnp.float32)    # (1, 4H)
    wfc_t = jnp.pad(jnp.transpose(w_fc),
                    ((0, 0), (0, O_pad - O))).astype(compute_dtype)  # (H, O_pad)
    bfc = jnp.pad(b_fc, (0, O_pad - O)).reshape(1, O_pad).astype(jnp.float32)

    kernel = functools.partial(_lstm_kernel, seq_len=T, batch_pad=B_pad,
                               hidden_size=H)

    out_pad = pl.pallas_call(
        kernel,
        out_shape=jax.ShapeDtypeStruct((B_pad, O_pad), jnp.float32),
        grid_spec=pltpu.PrefetchScalarGridSpec(
            num_scalar_prefetch=0,
            grid=(1,),                                 # single invocation
            in_specs=[
                pl.BlockSpec((T * B_pad, I), lambda i: (0, 0)),
                pl.BlockSpec((I, 4 * H), lambda i: (0, 0)),
                pl.BlockSpec((H, 4 * H), lambda i: (0, 0)),
                pl.BlockSpec((1, 4 * H), lambda i: (0, 0)),
                pl.BlockSpec((H, O_pad), lambda i: (0, 0)),
                pl.BlockSpec((1, O_pad), lambda i: (0, 0)),
            ],
            out_specs=pl.BlockSpec((B_pad, O_pad), lambda i: (0, 0)),
        ),
        compiler_params=pltpu.CompilerParams(
            dimension_semantics=("arbitrary",),
        ),
    )(x2d, wih_t, whh_t, bias, wfc_t, bfc)

    # Drop batch padding rows and output lane padding.
    return out_pad[:B, :O]


def _reference_forward(x_btf, w_ih, w_hh, b_ih, b_hh, w_fc, b_fc):
    """Pure-JAX reference matching torch.nn.LSTM + Linear semantics."""
    B, T, I = x_btf.shape
    H = w_hh.shape[1]
    h = jnp.zeros((B, H), jnp.float32)
    c = jnp.zeros((B, H), jnp.float32)
    bias = b_ih + b_hh
    for t in range(T):
        gates = x_btf[:, t, :] @ w_ih.T + h @ w_hh.T + bias
        i = jax.nn.sigmoid(gates[:, 0 * H:1 * H])
        f = jax.nn.sigmoid(gates[:, 1 * H:2 * H])
        g = jnp.tanh(gates[:, 2 * H:3 * H])
        o = jax.nn.sigmoid(gates[:, 3 * H:4 * H])
        c = f * c + i * g
        h = o * jnp.tanh(c)
    return h @ w_fc.T + b_fc


if __name__ == "__main__":
    # Shapes consistent with the module: hidden_size=64, small batch/seq/input.
    B, T, I = 2, 8, 16          # batch, seq_len, input_size (= X_train.shape[2])
    H = 64                      # hidden_size
    O = 4                       # output_size = number of classes

    key = jax.random.PRNGKey(0)
    keys = jax.random.split(key, 8)
    bound = 1.0 / jnp.sqrt(H)   # PyTorch default uniform init range

    x = jax.random.normal(keys[0], (B, T, I), jnp.float32)
    w_ih = jax.random.uniform(keys[1], (4 * H, I), jnp.float32, -bound, bound)
    w_hh = jax.random.uniform(keys[2], (4 * H, H), jnp.float32, -bound, bound)
    b_ih = jax.random.uniform(keys[3], (4 * H,), jnp.float32, -bound, bound)
    b_hh = jax.random.uniform(keys[4], (4 * H,), jnp.float32, -bound, bound)
    w_fc = jax.random.uniform(keys[5], (O, H), jnp.float32, -bound, bound)
    b_fc = jax.random.uniform(keys[6], (O,), jnp.float32, -bound, bound)

    out = rnn_classifier_forward(x, w_ih, w_hh, b_ih, b_hh, w_fc, b_fc)
    out = jax.block_until_ready(out)

    ref = _reference_forward(x, w_ih, w_hh, b_ih, b_hh, w_fc, b_fc)
    assert out.shape == (B, O), out.shape
    assert jnp.allclose(out, ref, atol=1e-4, rtol=1e-4), (out, ref)

    print("KERNEL_OK")
</pallas_src>

<mosaic_0001>
module attributes {stable_mosaic.version = 11 : i64} {
  func.func @_lstm_kernel(%arg0: i32, %arg1: memref<64x16xf32, #tpu.memory_space<vmem>>, %arg2: memref<16x256xf32, #tpu.memory_space<vmem>>, %arg3: memref<64x256xf32, #tpu.memory_space<vmem>>, %arg4: memref<1x256xf32, #tpu.memory_space<vmem>>, %arg5: memref<64x128xf32, #tpu.memory_space<vmem>>, %arg6: memref<1x128xf32, #tpu.memory_space<vmem>>, %arg7: memref<8x128xf32, #tpu.memory_space<vmem>>) attributes {dimension_semantics = [#tpu.dimension_semantics<arbitrary>], iteration_bounds = array<i64: 1>, scalar_prefetch = 0 : i64, scratch_operands = 0 : i64, tpu.core_type = #tpu.core_type<tc>, window_params = [{pipeline_mode = #tpu.pipeline_mode<synchronous>, transform_indices = @transform_0, window_bounds = array<i64: 64, 16>}, {pipeline_mode = #tpu.pipeline_mode<synchronous>, transform_indices = @transform_1, window_bounds = array<i64: 16, 256>}, {pipeline_mode = #tpu.pipeline_mode<synchronous>, transform_indices = @transform_2, window_bounds = array<i64: 64, 256>}, {pipeline_mode = #tpu.pipeline_mode<synchronous>, transform_indices = @transform_3, window_bounds = array<i64: 1, 256>}, {pipeline_mode = #tpu.pipeline_mode<synchronous>, transform_indices = @transform_4, window_bounds = array<i64: 64, 128>}, {pipeline_mode = #tpu.pipeline_mode<synchronous>, transform_indices = @transform_5, window_bounds = array<i64: 1, 128>}, {pipeline_mode = #tpu.pipeline_mode<synchronous>, transform_indices = @transform_6, window_bounds = array<i64: 8, 128>}]} {
    %c0 = arith.constant 0 : index
    %c0_0 = arith.constant 0 : index
    %0 = vector.load %arg1[%c0, %c0_0] : memref<64x16xf32, #tpu.memory_space<vmem>>, vector<64x16xf32>
    %c0_1 = arith.constant 0 : index
    %c0_2 = arith.constant 0 : index
    %1 = vector.load %arg2[%c0_1, %c0_2] : memref<16x256xf32, #tpu.memory_space<vmem>>, vector<16x256xf32>
    %cst = arith.constant dense<0.000000e+00> : vector<64x256xf32>
    %2 = tpu.matmul %0, %1, %cst {dimension_numbers = #tpu.dot_dimension_numbers<[1], [0], [0], [1], [0, 0, 1, 1], [], []>} : vector<64x16xf32>, vector<16x256xf32>, vector<64x256xf32> -> vector<64x256xf32>
    %c0_3 = arith.constant 0 : index
    %c0_4 = arith.constant 0 : index
    %3 = vector.load %arg4[%c0_3, %c0_4] : memref<1x256xf32, #tpu.memory_space<vmem>>, vector<1x256xf32>
    %4 = vector.broadcast %3 : vector<1x256xf32> to vector<64x256xf32>
    %5 = arith.addf %2, %4 : vector<64x256xf32>
    %cst_5 = arith.constant 0.000000e+00 : f32
    %6 = vector.broadcast %cst_5 : f32 to vector<8x64xf32>
    %cst_6 = arith.constant 0.000000e+00 : f32
    %7 = vector.broadcast %cst_6 : f32 to vector<8x64xf32>
    %c0_7 = arith.constant 0 : index
    %c0_8 = arith.constant 0 : index
    %8 = vector.load %arg3[%c0_7, %c0_8] : memref<64x256xf32, #tpu.memory_space<vmem>>, vector<64x256xf32>
    %9 = vector.extract_strided_slice %5 {offsets = [0, 0], sizes = [8, 256], strides = [1, 1]} : vector<64x256xf32> to vector<8x256xf32>
    %cst_9 = arith.constant dense<0.000000e+00> : vector<8x256xf32>
    %10 = tpu.matmul %6, %8, %cst_9 {dimension_numbers = #tpu.dot_dimension_numbers<[1], [0], [0], [1], [0, 0, 1, 1], [], []>} : vector<8x64xf32>, vector<64x256xf32>, vector<8x256xf32> -> vector<8x256xf32>
    %11 = arith.addf %9, %10 : vector<8x256xf32>
    %12 = vector.extract_strided_slice %11 {offsets = [0, 0], sizes = [8, 64], strides = [1, 1]} : vector<8x256xf32> to vector<8x64xf32>
    %13 = arith.negf %12 : vector<8x64xf32>
    %14 = math.exp %13 : vector<8x64xf32>
    %cst_10 = arith.constant 1.000000e+00 : f32
    %15 = vector.broadcast %cst_10 : f32 to vector<8x64xf32>
    %16 = arith.addf %15, %14 : vector<8x64xf32>
    %17 = arith.divf %15, %16 : vector<8x64xf32>
    %18 = vector.extract_strided_slice %11 {offsets = [0, 64], sizes = [8, 64], strides = [1, 1]} : vector<8x256xf32> to vector<8x64xf32>
    %19 = arith.negf %18 : vector<8x64xf32>
    %20 = math.exp %19 : vector<8x64xf32>
    %cst_11 = arith.constant 1.000000e+00 : f32
    %21 = vector.broadcast %cst_11 : f32 to vector<8x64xf32>
    %22 = arith.addf %21, %20 : vector<8x64xf32>
    %23 = arith.divf %21, %22 : vector<8x64xf32>
    %24 = vector.extract_strided_slice %11 {offsets = [0, 128], sizes = [8, 64], strides = [1, 1]} : vector<8x256xf32> to vector<8x64xf32>
    %25 = math.tanh %24 : vector<8x64xf32>
    %26 = vector.extract_strided_slice %11 {offsets = [0, 192], sizes = [8, 64], strides = [1, 1]} : vector<8x256xf32> to vector<8x64xf32>
    %27 = arith.negf %26 : vector<8x64xf32>
    %28 = math.exp %27 : vector<8x64xf32>
    %cst_12 = arith.constant 1.000000e+00 : f32
    %29 = vector.broadcast %cst_12 : f32 to vector<8x64xf32>
    %30 = arith.addf %29, %28 : vector<8x64xf32>
    %31 = arith.divf %29, %30 : vector<8x64xf32>
    %32 = arith.mulf %23, %7 : vector<8x64xf32>
    %33 = arith.mulf %17, %25 : vector<8x64xf32>
    %34 = arith.addf %32, %33 : vector<8x64xf32>
    %35 = math.tanh %34 : vector<8x64xf32>
    %36 = arith.mulf %31, %35 : vector<8x64xf32>
    %37 = vector.extract_strided_slice %5 {offsets = [8, 0], sizes = [8, 256], strides = [1, 1]} : vector<64x256xf32> to vector<8x256xf32>
    %cst_13 = arith.constant dense<0.000000e+00> : vector<8x256xf32>
    %38 = tpu.matmul %36, %8, %cst_13 {dimension_numbers = #tpu.dot_dimension_numbers<[1], [0], [0], [1], [0, 0, 1, 1], [], []>} : vector<8x64xf32>, vector<64x256xf32>, vector<8x256xf32> -> vector<8x256xf32>
    %39 = arith.addf %37, %38 : vector<8x256xf32>
    %40 = vector.extract_strided_slice %39 {offsets = [0, 0], sizes = [8, 64], strides = [1, 1]} : vector<8x256xf32> to vector<8x64xf32>
    %41 = arith.negf %40 : vector<8x64xf32>
    %42 = math.exp %41 : vector<8x64xf32>
    %cst_14 = arith.constant 1.000000e+00 : f32
    %43 = vector.broadcast %cst_14 : f32 to vector<8x64xf32>
    %44 = arith.addf %43, %42 : vector<8x64xf32>
    %45 = arith.divf %43, %44 : vector<8x64xf32>
    %46 = vector.extract_strided_slice %39 {offsets = [0, 64], sizes = [8, 64], strides = [1, 1]} : vector<8x256xf32> to vector<8x64xf32>
    %47 = arith.negf %46 : vector<8x64xf32>
    %48 = math.exp %47 : vector<8x64xf32>
    %cst_15 = arith.constant 1.000000e+00 : f32
    %49 = vector.broadcast %cst_15 : f32 to vector<8x64xf32>
    %50 = arith.addf %49, %48 : vector<8x64xf32>
    %51 = arith.divf %49, %50 : vector<8x64xf32>
    %52 = vector.extract_strided_slice %39 {offsets = [0, 128], sizes = [8, 64], strides = [1, 1]} : vector<8x256xf32> to vector<8x64xf32>
    %53 = math.tanh %52 : vector<8x64xf32>
    %54 = vector.extract_strided_slice %39 {offsets = [0, 192], sizes = [8, 64], strides = [1, 1]} : vector<8x256xf32> to vector<8x64xf32>
    %55 = arith.negf %54 : vector<8x64xf32>
    %56 = math.exp %55 : vector<8x64xf32>
    %cst_16 = arith.constant 1.000000e+00 : f32
    %57 = vector.broadcast %cst_16 : f32 to vector<8x64xf32>
    %58 = arith.addf %57, %56 : vector<8x64xf32>
    %59 = arith.divf %57, %58 : vector<8x64xf32>
    %60 = arith.mulf %51, %34 : vector<8x64xf32>
    %61 = arith.mulf %45, %53 : vector<8x64xf32>
    %62 = arith.addf %60, %61 : vector<8x64xf32>
    %63 = math.tanh %62 : vector<8x64xf32>
    %64 = arith.mulf %59, %63 : vector<8x64xf32>
    %65 = vector.extract_strided_slice %5 {offsets = [16, 0], sizes = [8, 256], strides = [1, 1]} : vector<64x256xf32> to vector<8x256xf32>
    %cst_17 = arith.constant dense<0.000000e+00> : vector<8x256xf32>
    %66 = tpu.matmul %64, %8, %cst_17 {dimension_numbers = #tpu.dot_dimension_numbers<[1], [0], [0], [1], [0, 0, 1, 1], [], []>} : vector<8x64xf32>, vector<64x256xf32>, vector<8x256xf32> -> vector<8x256xf32>
    %67 = arith.addf %65, %66 : vector<8x256xf32>
    %68 = vector.extract_strided_slice %67 {offsets = [0, 0], sizes = [8, 64], strides = [1, 1]} : vector<8x256xf32> to vector<8x64xf32>
    %69 = arith.negf %68 : vector<8x64xf32>
    %70 = math.exp %69 : vector<8x64xf32>
    %cst_18 = arith.constant 1.000000e+00 : f32
    %71 = vector.broadcast %cst_18 : f32 to vector<8x64xf32>
    %72 = arith.addf %71, %70 : vector<8x64xf32>
    %73 = arith.divf %71, %72 : vector<8x64xf32>
    %74 = vector.extract_strided_slice %67 {offsets = [0, 64], sizes = [8, 64], strides = [1, 1]} : vector<8x256xf32> to vector<8x64xf32>
    %75 = arith.negf %74 : vector<8x64xf32>
    %76 = math.exp %75 : vector<8x64xf32>
    %cst_19 = arith.constant 1.000000e+00 : f32
    %77 = vector.broadcast %cst_19 : f32 to vector<8x64xf32>
    %78 = arith.addf %77, %76 : vector<8x64xf32>
    %79 = arith.divf %77, %78 : vector<8x64xf32>
    %80 = vector.extract_strided_slice %67 {offsets = [0, 128], sizes = [8, 64], strides = [1, 1]} : vector<8x256xf32> to vector<8x64xf32>
    %81 = math.tanh %80 : vector<8x64xf32>
    %82 = vector.extract_strided_slice %67 {offsets = [0, 192], sizes = [8, 64], strides = [1, 1]} : vector<8x256xf32> to vector<8x64xf32>
    %83 = arith.negf %82 : vector<8x64xf32>
    %84 = math.exp %83 : vector<8x64xf32>
    %cst_20 = arith.constant 1.000000e+00 : f32
    %85 = vector.broadcast %cst_20 : f32 to vector<8x64xf32>
    %86 = arith.addf %85, %84 : vector<8x64xf32>
    %87 = arith.divf %85, %86 : vector<8x64xf32>
    %88 = arith.mulf %79, %62 : vector<8x64xf32>
    %89 = arith.mulf %73, %81 : vector<8x64xf32>
    %90 = arith.addf %88, %89 : vector<8x64xf32>
    %91 = math.tanh %90 : vector<8x64xf32>
    %92 = arith.mulf %87, %91 : vector<8x64xf32>
    %93 = vector.extract_strided_slice %5 {offsets = [24, 0], sizes = [8, 256], strides = [1, 1]} : vector<64x256xf32> to vector<8x256xf32>
    %cst_21 = arith.constant dense<0.000000e+00> : vector<8x256xf32>
    %94 = tpu.matmul %92, %8, %cst_21 {dimension_numbers = #tpu.dot_dimension_numbers<[1], [0], [0], [1], [0, 0, 1, 1], [], []>} : vector<8x64xf32>, vector<64x256xf32>, vector<8x256xf32> -> vector<8x256xf32>
    %95 = arith.addf %93, %94 : vector<8x256xf32>
    %96 = vector.extract_strided_slice %95 {offsets = [0, 0], sizes = [8, 64], strides = [1, 1]} : vector<8x256xf32> to vector<8x64xf32>
    %97 = arith.negf %96 : vector<8x64xf32>
    %98 = math.exp %97 : vector<8x64xf32>
    %cst_22 = arith.constant 1.000000e+00 : f32
    %99 = vector.broadcast %cst_22 : f32 to vector<8x64xf32>
    %100 = arith.addf %99, %98 : vector<8x64xf32>
    %101 = arith.divf %99, %100 : vector<8x64xf32>
    %102 = vector.extract_strided_slice %95 {offsets = [0, 64], sizes = [8, 64], strides = [1, 1]} : vector<8x256xf32> to vector<8x64xf32>
    %103 = arith.negf %102 : vector<8x64xf32>
    %104 = math.exp %103 : vector<8x64xf32>
    %cst_23 = arith.constant 1.000000e+00 : f32
    %105 = vector.broadcast %cst_23 : f32 to vector<8x64xf32>
    %106 = arith.addf %105, %104 : vector<8x64xf32>
    %107 = arith.divf %105, %106 : vector<8x64xf32>
    %108 = vector.extract_strided_slice %95 {offsets = [0, 128], sizes = [8, 64], strides = [1, 1]} : vector<8x256xf32> to vector<8x64xf32>
    %109 = math.tanh %108 : vector<8x64xf32>
    %110 = vector.extract_strided_slice %95 {offsets = [0, 192], sizes = [8, 64], strides = [1, 1]} : vector<8x256xf32> to vector<8x64xf32>
    %111 = arith.negf %110 : vector<8x64xf32>
    %112 = math.exp %111 : vector<8x64xf32>
    %cst_24 = arith.constant 1.000000e+00 : f32
    %113 = vector.broadcast %cst_24 : f32 to vector<8x64xf32>
    %114 = arith.addf %113, %112 : vector<8x64xf32>
    %115 = arith.divf %113, %114 : vector<8x64xf32>
    %116 = arith.mulf %107, %90 : vector<8x64xf32>
    %117 = arith.mulf %101, %109 : vector<8x64xf32>
    %118 = arith.addf %116, %117 : vector<8x64xf32>
    %119 = math.tanh %118 : vector<8x64xf32>
    %120 = arith.mulf %115, %119 : vector<8x64xf32>
    %121 = vector.extract_strided_slice %5 {offsets = [32, 0], sizes = [8, 256], strides = [1, 1]} : vector<64x256xf32> to vector<8x256xf32>
    %cst_25 = arith.constant dense<0.000000e+00> : vector<8x256xf32>
    %122 = tpu.matmul %120, %8, %cst_25 {dimension_numbers = #tpu.dot_dimension_numbers<[1], [0], [0], [1], [0, 0, 1, 1], [], []>} : vector<8x64xf32>, vector<64x256xf32>, vector<8x256xf32> -> vector<8x256xf32>
    %123 = arith.addf %121, %122 : vector<8x256xf32>
    %124 = vector.extract_strided_slice %123 {offsets = [0, 0], sizes = [8, 64], strides = [1, 1]} : vector<8x256xf32> to vector<8x64xf32>
    %125 = arith.negf %124 : vector<8x64xf32>
    %126 = math.exp %125 : vector<8x64xf32>
    %cst_26 = arith.constant 1.000000e+00 : f32
    %127 = vector.broadcast %cst_26 : f32 to vector<8x64xf32>
    %128 = arith.addf %127, %126 : vector<8x64xf32>
    %129 = arith.divf %127, %128 : vector<8x64xf32>
    %130 = vector.extract_strided_slice %123 {offsets = [0, 64], sizes = [8, 64], strides = [1, 1]} : vector<8x256xf32> to vector<8x64xf32>
    %131 = arith.negf %130 : vector<8x64xf32>
    %132 = math.exp %131 : vector<8x64xf32>
    %cst_27 = arith.constant 1.000000e+00 : f32
    %133 = vector.broadcast %cst_27 : f32 to vector<8x64xf32>
    %134 = arith.addf %133, %132 : vector<8x64xf32>
    %135 = arith.divf %133, %134 : vector<8x64xf32>
    %136 = vector.extract_strided_slice %123 {offsets = [0, 128], sizes = [8, 64], strides = [1, 1]} : vector<8x256xf32> to vector<8x64xf32>
    %137 = math.tanh %136 : vector<8x64xf32>
    %138 = vector.extract_strided_slice %123 {offsets = [0, 192], sizes = [8, 64], strides = [1, 1]} : vector<8x256xf32> to vector<8x64xf32>
    %139 = arith.negf %138 : vector<8x64xf32>
    %140 = math.exp %139 : vector<8x64xf32>
    %cst_28 = arith.constant 1.000000e+00 : f32
    %141 = vector.broadcast %cst_28 : f32 to vector<8x64xf32>
    %142 = arith.addf %141, %140 : vector<8x64xf32>
    %143 = arith.divf %141, %142 : vector<8x64xf32>
    %144 = arith.mulf %135, %118 : vector<8x64xf32>
    %145 = arith.mulf %129, %137 : vector<8x64xf32>
    %146 = arith.addf %144, %145 : vector<8x64xf32>
    %147 = math.tanh %146 : vector<8x64xf32>
    %148 = arith.mulf %143, %147 : vector<8x64xf32>
    %149 = vector.extract_strided_slice %5 {offsets = [40, 0], sizes = [8, 256], strides = [1, 1]} : vector<64x256xf32> to vector<8x256xf32>
    %cst_29 = arith.constant dense<0.000000e+00> : vector<8x256xf32>
    %150 = tpu.matmul %148, %8, %cst_29 {dimension_numbers = #tpu.dot_dimension_numbers<[1], [0], [0], [1], [0, 0, 1, 1], [], []>} : vector<8x64xf32>, vector<64x256xf32>, vector<8x256xf32> -> vector<8x256xf32>
    %151 = arith.addf %149, %150 : vector<8x256xf32>
    %152 = vector.extract_strided_slice %151 {offsets = [0, 0], sizes = [8, 64], strides = [1, 1]} : vector<8x256xf32> to vector<8x64xf32>
    %153 = arith.negf %152 : vector<8x64xf32>
    %154 = math.exp %153 : vector<8x64xf32>
    %cst_30 = arith.constant 1.000000e+00 : f32
    %155 = vector.broadcast %cst_30 : f32 to vector<8x64xf32>
    %156 = arith.addf %155, %154 : vector<8x64xf32>
    %157 = arith.divf %155, %156 : vector<8x64xf32>
    %158 = vector.extract_strided_slice %151 {offsets = [0, 64], sizes = [8, 64], strides = [1, 1]} : vector<8x256xf32> to vector<8x64xf32>
    %159 = arith.negf %158 : vector<8x64xf32>
    %160 = math.exp %159 : vector<8x64xf32>
    %cst_31 = arith.constant 1.000000e+00 : f32
    %161 = vector.broadcast %cst_31 : f32 to vector<8x64xf32>
    %162 = arith.addf %161, %160 : vector<8x64xf32>
    %163 = arith.divf %161, %162 : vector<8x64xf32>
    %164 = vector.extract_strided_slice %151 {offsets = [0, 128], sizes = [8, 64], strides = [1, 1]} : vector<8x256xf32> to vector<8x64xf32>
    %165 = math.tanh %164 : vector<8x64xf32>
    %166 = vector.extract_strided_slice %151 {offsets = [0, 192], sizes = [8, 64], strides = [1, 1]} : vector<8x256xf32> to vector<8x64xf32>
    %167 = arith.negf %166 : vector<8x64xf32>
    %168 = math.exp %167 : vector<8x64xf32>
    %cst_32 = arith.constant 1.000000e+00 : f32
    %169 = vector.broadcast %cst_32 : f32 to vector<8x64xf32>
    %170 = arith.addf %169, %168 : vector<8x64xf32>
    %171 = arith.divf %169, %170 : vector<8x64xf32>
    %172 = arith.mulf %163, %146 : vector<8x64xf32>
    %173 = arith.mulf %157, %165 : vector<8x64xf32>
    %174 = arith.addf %172, %173 : vector<8x64xf32>
    %175 = math.tanh %174 : vector<8x64xf32>
    %176 = arith.mulf %171, %175 : vector<8x64xf32>
    %177 = vector.extract_strided_slice %5 {offsets = [48, 0], sizes = [8, 256], strides = [1, 1]} : vector<64x256xf32> to vector<8x256xf32>
    %cst_33 = arith.constant dense<0.000000e+00> : vector<8x256xf32>
    %178 = tpu.matmul %176, %8, %cst_33 {dimension_numbers = #tpu.dot_dimension_numbers<[1], [0], [0], [1], [0, 0, 1, 1], [], []>} : vector<8x64xf32>, vector<64x256xf32>, vector<8x256xf32> -> vector<8x256xf32>
    %179 = arith.addf %177, %178 : vector<8x256xf32>
    %180 = vector.extract_strided_slice %179 {offsets = [0, 0], sizes = [8, 64], strides = [1, 1]} : vector<8x256xf32> to vector<8x64xf32>
    %181 = arith.negf %180 : vector<8x64xf32>
    %182 = math.exp %181 : vector<8x64xf32>
    %cst_34 = arith.constant 1.000000e+00 : f32
    %183 = vector.broadcast %cst_34 : f32 to vector<8x64xf32>
    %184 = arith.addf %183, %182 : vector<8x64xf32>
    %185 = arith.divf %183, %184 : vector<8x64xf32>
    %186 = vector.extract_strided_slice %179 {offsets = [0, 64], sizes = [8, 64], strides = [1, 1]} : vector<8x256xf32> to vector<8x64xf32>
    %187 = arith.negf %186 : vector<8x64xf32>
    %188 = math.exp %187 : vector<8x64xf32>
    %cst_35 = arith.constant 1.000000e+00 : f32
    %189 = vector.broadcast %cst_35 : f32 to vector<8x64xf32>
    %190 = arith.addf %189, %188 : vector<8x64xf32>
    %191 = arith.divf %189, %190 : vector<8x64xf32>
    %192 = vector.extract_strided_slice %179 {offsets = [0, 128], sizes = [8, 64], strides = [1, 1]} : vector<8x256xf32> to vector<8x64xf32>
    %193 = math.tanh %192 : vector<8x64xf32>
    %194 = vector.extract_strided_slice %179 {offsets = [0, 192], sizes = [8, 64], strides = [1, 1]} : vector<8x256xf32> to vector<8x64xf32>
    %195 = arith.negf %194 : vector<8x64xf32>
    %196 = math.exp %195 : vector<8x64xf32>
    %cst_36 = arith.constant 1.000000e+00 : f32
    %197 = vector.broadcast %cst_36 : f32 to vector<8x64xf32>
    %198 = arith.addf %197, %196 : vector<8x64xf32>
    %199 = arith.divf %197, %198 : vector<8x64xf32>
    %200 = arith.mulf %191, %174 : vector<8x64xf32>
    %201 = arith.mulf %185, %193 : vector<8x64xf32>
    %202 = arith.addf %200, %201 : vector<8x64xf32>
    %203 = math.tanh %202 : vector<8x64xf32>
    %204 = arith.mulf %199, %203 : vector<8x64xf32>
    %205 = vector.extract_strided_slice %5 {offsets = [56, 0], sizes = [8, 256], strides = [1, 1]} : vector<64x256xf32> to vector<8x256xf32>
    %cst_37 = arith.constant dense<0.000000e+00> : vector<8x256xf32>
    %206 = tpu.matmul %204, %8, %cst_37 {dimension_numbers = #tpu.dot_dimension_numbers<[1], [0], [0], [1], [0, 0, 1, 1], [], []>} : vector<8x64xf32>, vector<64x256xf32>, vector<8x256xf32> -> vector<8x256xf32>
    %207 = arith.addf %205, %206 : vector<8x256xf32>
    %208 = vector.extract_strided_slice %207 {offsets = [0, 0], sizes = [8, 64], strides = [1, 1]} : vector<8x256xf32> to vector<8x64xf32>
    %209 = arith.negf %208 : vector<8x64xf32>
    %210 = math.exp %209 : vector<8x64xf32>
    %cst_38 = arith.constant 1.000000e+00 : f32
    %211 = vector.broadcast %cst_38 : f32 to vector<8x64xf32>
    %212 = arith.addf %211, %210 : vector<8x64xf32>
    %213 = arith.divf %211, %212 : vector<8x64xf32>
    %214 = vector.extract_strided_slice %207 {offsets = [0, 64], sizes = [8, 64], strides = [1, 1]} : vector<8x256xf32> to vector<8x64xf32>
    %215 = arith.negf %214 : vector<8x64xf32>
    %216 = math.exp %215 : vector<8x64xf32>
    %cst_39 = arith.constant 1.000000e+00 : f32
    %217 = vector.broadcast %cst_39 : f32 to vector<8x64xf32>
    %218 = arith.addf %217, %216 : vector<8x64xf32>
    %219 = arith.divf %217, %218 : vector<8x64xf32>
    %220 = vector.extract_strided_slice %207 {offsets = [0, 128], sizes = [8, 64], strides = [1, 1]} : vector<8x256xf32> to vector<8x64xf32>
    %221 = math.tanh %220 : vector<8x64xf32>
    %222 = vector.extract_strided_slice %207 {offsets = [0, 192], sizes = [8, 64], strides = [1, 1]} : vector<8x256xf32> to vector<8x64xf32>
    %223 = arith.negf %222 : vector<8x64xf32>
    %224 = math.exp %223 : vector<8x64xf32>
    %cst_40 = arith.constant 1.000000e+00 : f32
    %225 = vector.broadcast %cst_40 : f32 to vector<8x64xf32>
    %226 = arith.addf %225, %224 : vector<8x64xf32>
    %227 = arith.divf %225, %226 : vector<8x64xf32>
    %228 = arith.mulf %219, %202 : vector<8x64xf32>
    %229 = arith.mulf %213, %221 : vector<8x64xf32>
    %230 = arith.addf %228, %229 : vector<8x64xf32>
    %231 = math.tanh %230 : vector<8x64xf32>
    %232 = arith.mulf %227, %231 : vector<8x64xf32>
    %c0_41 = arith.constant 0 : index
    %c0_42 = arith.constant 0 : index
    %233 = vector.load %arg5[%c0_41, %c0_42] : memref<64x128xf32, #tpu.memory_space<vmem>>, vector<64x128xf32>
    %cst_43 = arith.constant dense<0.000000e+00> : vector<8x128xf32>
    %234 = tpu.matmul %232, %233, %cst_43 {dimension_numbers = #tpu.dot_dimension_numbers<[1], [0], [0], [1], [0, 0, 1, 1], [], []>} : vector<8x64xf32>, vector<64x128xf32>, vector<8x128xf32> -> vector<8x128xf32>
    %c0_44 = arith.constant 0 : index
    %c0_45 = arith.constant 0 : index
    %235 = vector.load %arg6[%c0_44, %c0_45] : memref<1x128xf32, #tpu.memory_space<vmem>>, vector<1x128xf32>
    %236 = vector.broadcast %235 : vector<1x128xf32> to vector<8x128xf32>
    %237 = arith.addf %234, %236 : vector<8x128xf32>
    %c0_46 = arith.constant 0 : index
    %c0_47 = arith.constant 0 : index
    %238 = vector.load %arg7[%c0_46, %c0_47] : memref<8x128xf32, #tpu.memory_space<vmem>>, vector<8x128xf32>
    tpu.vector_store %arg7[%c0_46, %c0_47], %237 {strides = array<i32>} : memref<8x128xf32, #tpu.memory_space<vmem>>, vector<8x128xf32>,
    return
  }
  func.func @transform_0(%arg0: i32) -> (i32, i32) {
    %c0_i32 = arith.constant 0 : i32
    %c0_i32_0 = arith.constant 0 : i32
    %c0_i32_1 = arith.constant 0 : i32
    return %c0_i32, %c0_i32_0 : i32, i32
  }
  func.func @transform_1(%arg0: i32) -> (i32, i32) {
    %c0_i32 = arith.constant 0 : i32
    %c0_i32_0 = arith.constant 0 : i32
    %c0_i32_1 = arith.constant 0 : i32
    return %c0_i32, %c0_i32_0 : i32, i32
  }
  func.func @transform_2(%arg0: i32) -> (i32, i32) {
    %c0_i32 = arith.constant 0 : i32
    %c0_i32_0 = arith.constant 0 : i32
    %c0_i32_1 = arith.constant 0 : i32
    return %c0_i32, %c0_i32_0 : i32, i32
  }
  func.func @transform_3(%arg0: i32) -> (i32, i32) {
    %c0_i32 = arith.constant 0 : i32
    %c0_i32_0 = arith.constant 0 : i32
    %c0_i32_1 = arith.constant 0 : i32
    return %c0_i32, %c0_i32_0 : i32, i32
  }
  func.func @transform_4(%arg0: i32) -> (i32, i32) {
    %c0_i32 = arith.constant 0 : i32
    %c0_i32_0 = arith.constant 0 : i32
    %c0_i32_1 = arith.constant 0 : i32
    return %c0_i32, %c0_i32_0 : i32, i32
  }
  func.func @transform_5(%arg0: i32) -> (i32, i32) {
    %c0_i32 = arith.constant 0 : i32
    %c0_i32_0 = arith.constant 0 : i32
    %c0_i32_1 = arith.constant 0 : i32
    return %c0_i32, %c0_i32_0 : i32, i32
  }
  func.func @transform_6(%arg0: i32) -> (i32, i32) {
    %c0_i32 = arith.constant 0 : i32
    %c0_i32_0 = arith.constant 0 : i32
    %c0_i32_1 = arith.constant 0 : i32
    return %c0_i32, %c0_i32_0 : i32, i32
  }
}

</mosaic_0001>

<llo_original>
// kernel: tpu_custom_call.1
$region0: #{tpu_custom_call.1}
  #allocation0 [shape = 'u32[]', space=smem, size = 0x4, offset = 0x4, fixed_abs, tag = 'smem constant byte address 0x4 - core index']
  #allocation1 [shape = 'u32[144,128]{1,0:T(1,128)}', space=vmem, size = 0x12000, scoped, tag = 'internal scratch']
  %s0 = inlined_call_operand.vmem [shape: f32[64,16], index: 0, kind: input, shape index: {}]
  %s1 = inlined_call_operand.hbm [shape: f32[16,256], index: 1, kind: input, shape index: {}]
  %s2 = inlined_call_operand.hbm [shape: f32[64,256], index: 2, kind: input, shape index: {}]
  %s3 = inlined_call_operand.vmem [shape: f32[1,256], index: 3, kind: input, shape index: {}]
  %s4 = inlined_call_operand.vmem [shape: f32[64,128], index: 4, kind: input, shape index: {}]
  %s5 = inlined_call_operand.vmem [shape: f32[1,128], index: 5, kind: input, shape index: {}]
  %s6 = inlined_call_operand.hbm [shape: f32[8,128], index: 6, kind: output, shape index: {}]
  %s7 = sld [smem:[#allocation0]]
  $region42: #{tpu_custom_call.1} parent=0
    _
  %s9 = ssub.s32 1, %s7
  %s10 = scalar_select 0, %s9, %s7
  $region1: #{tpu_custom_call.1} parent=0
    #allocation2 [shape = 'u8[16384]{0}', space=vmem, size = 0x4000, scoped, tag = 'input window, operand 1, single buffered']
    #allocation3 [shape = 's32[1]{0}', space=sflag, size = 0x4, scoped, tag = 'scoped memory for tpu_custom_call.1']
    #allocation4 [shape = 's32[1]{0}', space=sflag, size = 0x4, scoped, tag = 'scoped memory for tpu_custom_call.1']
    #allocation5 [shape = 'u8[65536]{0}', space=vmem, size = 0x10000, scoped, tag = 'input window, operand 2, single buffered']
    #allocation6 [shape = 's32[1]{0}', space=sflag, size = 0x4, scoped, tag = 'scoped memory for tpu_custom_call.1']
    #allocation7 [shape = 'u8[4096]{0}', space=vmem, size = 0x1000, scoped, tag = 'output window, operand 0, single buffered']
    %11 = vsyncpa [#allocation3], 0
    %12 = vsyncpa [#allocation6], 0
    %13 = vsyncpa [#allocation4], 0
    // Predicated region
    $region2: #{tpu_custom_call.1} parent=1 // pred_check
      _
    $region3: #{tpu_custom_call.1} parent=1 // pred_check_branch
      %15 = sbr.rel (0) target = $region5
    $region4: #{tpu_custom_call.1} parent=1 // pred_region
      _
    $region5: #{tpu_custom_call.1} parent=1 // pred_fallthru
      _
    // Predicated region
    $region6: #{tpu_custom_call.1} parent=1 // pred_check
      _
    $region7: #{tpu_custom_call.1} parent=1 // pred_check_branch
      %17 = sbr.rel (0) target = $region9
    $region8: #{tpu_custom_call.1} parent=1 // pred_region
      %s19 = ssub.s32 512, 512
      %20 = vsyncadd [#allocation3], %s19
      %s21 = sshll.u32 [#allocation2], 4
      %s22 = int_to_ptr.vmem [resolvable:$true] %s21
      %27 = dma.hbm_to_vmem [thread:$0]  %s1, 512, %s22, [#allocation3], 256, 256, 16
    $region9: #{tpu_custom_call.1} parent=1 // pred_fallthru
      _
    // Predicated region
    $region10: #{tpu_custom_call.1} parent=1 // pred_check
      _
    $region11: #{tpu_custom_call.1} parent=1 // pred_check_branch
      %29 = sbr.rel (0) target = $region13
    $region12: #{tpu_custom_call.1} parent=1 // pred_region
      %s31 = ssub.s32 2048, 2048
      %32 = vsyncadd [#allocation6], %s31
      %s33 = sshll.u32 [#allocation5], 4
      %s34 = int_to_ptr.vmem [resolvable:$true] %s33
      %39 = dma.hbm_to_vmem [thread:$0]  %s2, 2048, %s34, [#allocation6], 256, 256, 16
    $region13: #{tpu_custom_call.1} parent=1 // pred_fallthru
      _
    // Predicated region
    $region14: #{tpu_custom_call.1} parent=1 // pred_check
      _
    $region15: #{tpu_custom_call.1} parent=1 // pred_check_branch
      %41 = sbr.rel (0) target = $region17
    $region16: #{tpu_custom_call.1} parent=1 // pred_region
      _
    $region17: #{tpu_custom_call.1} parent=1 // pred_fallthru
      _
    // Predicated region
    $region18: #{tpu_custom_call.1} parent=1 // pred_check
      _
    $region19: #{tpu_custom_call.1} parent=1 // pred_check_branch
      %43 = sbr.rel (0) target = $region21
    $region20: #{tpu_custom_call.1} parent=1 // pred_region
      _
    $region21: #{tpu_custom_call.1} parent=1 // pred_fallthru
      _
    // Predicated region
    $region22: #{tpu_custom_call.1} parent=1 // pred_check
      _
    $region23: #{tpu_custom_call.1} parent=1 // pred_check_branch
      %45 = sbr.rel (0) target = $region25
    $region24: #{tpu_custom_call.1} parent=1 // pred_region
      _
    $region25: #{tpu_custom_call.1} parent=1 // pred_fallthru
      _
    // Predicated region
    $region26: #{tpu_custom_call.1} parent=1 // pred_check
      _
    $region27: #{tpu_custom_call.1} parent=1 // pred_check_branch
      %47 = sbr.rel (0) target = $region29
    $region28: #{tpu_custom_call.1} parent=1 // pred_region
      %48 = dma.done [#allocation3], 512
    $region29: #{tpu_custom_call.1} parent=1 // pred_fallthru
      _
    // Predicated region
    $region30: #{tpu_custom_call.1} parent=1 // pred_check
      _
    $region31: #{tpu_custom_call.1} parent=1 // pred_check_branch
      %50 = sbr.rel (0) target = $region33
    $region32: #{tpu_custom_call.1} parent=1 // pred_region
      %51 = dma.done [#allocation6], 2048
    $region33: #{tpu_custom_call.1} parent=1 // pred_fallthru
      _
    %v52 = vld [vmem:[%s0] sm:$0xff]
    %v53 = vld [vmem:[%s0 + $0x8] sm:$0xff]
    %v54 = vld [vmem:[%s0 + $0x10] sm:$0xff]
    %v55 = vld [vmem:[%s0 + $0x18] sm:$0xff]
    %v56 = vld [vmem:[%s0 + $0x20] sm:$0xff]
    %v57 = vld [vmem:[%s0 + $0x28] sm:$0xff]
    %v58 = vld [vmem:[%s0 + $0x30] sm:$0xff]
    %v59 = vld [vmem:[%s0 + $0x38] sm:$0xff]
    %v60 = vld [vmem:[#allocation2] sm:$0xff]
    %v61 = vld [vmem:[#allocation2 + $0x8] sm:$0xff]
    %v62 = vld [vmem:[#allocation2 + $0x10] sm:$0xff]
    %v63 = vld [vmem:[#allocation2 + $0x18] sm:$0xff]
    %v64 = vld [vmem:[%s3] sm:$0x3]
    %v66 = vlaneseq
    %v67 = vshrl.u32 %v66, 7
    %v68 = vsub.s32 0, %v67
    %v69 = vrot.slane %v64, %v68
    %v70 = vlaneseq
    %v71 = vshrl.u32 %v70, 7
    %v72 = vsub.s32 1, %v71
    %v73 = vrot.slane %v64, %v72
    %vm76 = vcmask 130048
    %v78 = vsel %vm76, %v52, 0
    %v81 = vsel %vm76, %v53, 0
    %v84 = vsel %vm76, %v54, 0
    %v87 = vsel %vm76, %v55, 0
    %v90 = vsel %vm76, %v56, 0
    %v93 = vsel %vm76, %v57, 0
    %v96 = vsel %vm76, %v58, 0
    %v99 = vsel %vm76, %v59, 0
    %101 = vmatprep.subr.mxu0 %v61
    %102 = vmatpush1.msra.mxu0 %v60
    %103 = vmatprep.subr.mxu0 %v63
    %104 = vmatpush1.msra.mxu0 %v62
    %105 = vmatprep.subr.mxu0 0.0
    %106 = vmatpush1.msra.mxu0 0.0
    %107 = vmatprep.subr.mxu0 0.0
    %108 = vmatpush1.msra.mxu0 0.0
    %109 = vmatprep.subr.mxu0 0.0
    %110 = vmatpush1.msra.mxu0 0.0
    %111 = vmatprep.subr.mxu0 0.0
    %112 = vmatpush1.msra.mxu0 0.0
    %113 = vmatprep.subr.mxu0 0.0
    %114 = vmatpush1.msra.mxu0 0.0
    %115 = vmatprep.subr.mxu0 0.0
    %116 = vmatpush1.msra.mxu0 0.0
    %117 = vmatprep.subr.mxu0 0.0
    %118 = vmatpush1.msra.mxu0 0.0
    %119 = vmatprep.subr.mxu0 0.0
    %120 = vmatpush1.msra.mxu0 0.0
    %121 = vmatprep.subr.mxu0 0.0
    %122 = vmatpush1.msra.mxu0 0.0
    %123 = vmatprep.subr.mxu0 0.0
    %124 = vmatpush1.msra.mxu0 0.0
    %125 = vmatprep.subr.mxu0 0.0
    %126 = vmatpush1.msra.mxu0 0.0
    %127 = vmatprep.subr.mxu0 0.0
    %128 = vmatpush1.msra.mxu0 0.0
    %129 = vmatprep.subr.mxu0 0.0
    %130 = vmatpush1.msra.mxu0 0.0
    %131 = vmatprep.subr.mxu0 0.0
    %132 = vmatpush1.msra.mxu0 0.0
    %133 = vmatprep.subr.mxu0 0.0
    %134 = vmatpush1.msra.mxu0 0.0
    %135 = vmatprep.subr.mxu0 0.0
    %136 = vmatpush1.msra.mxu0 0.0
    %137 = vmatprep.subr.mxu0 0.0
    %138 = vmatpush1.msra.mxu0 0.0
    %139 = vmatprep.subr.mxu0 0.0
    %140 = vmatpush1.msra.mxu0 0.0
    %141 = vmatprep.subr.mxu0 0.0
    %142 = vmatpush1.msra.mxu0 0.0
    %143 = vmatprep.subr.mxu0 0.0
    %144 = vmatpush1.msra.mxu0 0.0
    %145 = vmatprep.subr.mxu0 0.0
    %146 = vmatpush1.msra.mxu0 0.0
    %147 = vmatprep.subr.mxu0 0.0
    %148 = vmatpush1.msra.mxu0 0.0
    %149 = vmatprep.subr.mxu0 0.0
    %150 = vmatpush1.msra.mxu0 0.0
    %151 = vmatprep.subr.mxu0 0.0
    %152 = vmatpush1.msra.mxu0 0.0
    %153 = vmatprep.subr.mxu0 0.0
    %154 = vmatpush1.msra.mxu0 0.0
    %155 = vmatprep.subr.mxu0 0.0
    %156 = vmatpush1.msra.mxu0 0.0
    %157 = vmatprep.subr.mxu0 0.0
    %158 = vmatpush1.msra.mxu0 0.0
    %159 = vmatprep.subr.mxu0 0.0
    %160 = vmatpush1.msra.mxu0 0.0
    %161 = vmatprep.subr.mxu0 0.0
    %162 = vmatpush1.msra.mxu0 0.0
    %163 = vmatprep.subr.mxu0 0.0
    %164 = vmatpush1.msra.mxu0 0.0
    %165 = vmatprep.mubr.f32.mxu0 0.0
    %166 = vmatmul.mubr.f32.gmra.mrb[0].mxu0 %v78
    %v167 = vpop.f32.mrb[0].mxu0
    %v168 = vadd.f32 %v69, %v167
    %v169 = vpop.f32.mrb[0].mxu0
    %v170 = vadd.f32 %v73, %v169
    %171 = vmatprep.mubr.f32.mxu0 0.0
    %172 = vmatmul.mubr.f32.gmra.mrb[0].mxu0 %v81
    %v173 = vpop.f32.mrb[0].mxu0
    %v174 = vadd.f32 %v69, %v173
    %v175 = vpop.f32.mrb[0].mxu0
    %v176 = vadd.f32 %v73, %v175
    %177 = vmatprep.mubr.f32.mxu0 0.0
    %178 = vmatmul.mubr.f32.gmra.mrb[0].mxu0 %v84
    %v179 = vpop.f32.mrb[0].mxu0
    %v180 = vadd.f32 %v69, %v179
    %v181 = vpop.f32.mrb[0].mxu0
    %v182 = vadd.f32 %v73, %v181
    %183 = vmatprep.mubr.f32.mxu0 0.0
    %184 = vmatmul.mubr.f32.gmra.mrb[0].mxu0 %v87
    %v185 = vpop.f32.mrb[0].mxu0
    %v186 = vadd.f32 %v69, %v185
    %v187 = vpop.f32.mrb[0].mxu0
    %v188 = vadd.f32 %v73, %v187
    %189 = vmatprep.mubr.f32.mxu0 0.0
    %190 = vmatmul.mubr.f32.gmra.mrb[0].mxu0 %v90
    %v191 = vpop.f32.mrb[0].mxu0
    %v192 = vadd.f32 %v69, %v191
    %v193 = vpop.f32.mrb[0].mxu0
    %v194 = vadd.f32 %v73, %v193
    %195 = vmatprep.mubr.f32.mxu0 0.0
    %196 = vmatmul.mubr.f32.gmra.mrb[0].mxu0 %v93
    %v197 = vpop.f32.mrb[0].mxu0
    %v198 = vadd.f32 %v69, %v197
    %v199 = vpop.f32.mrb[0].mxu0
    %v200 = vadd.f32 %v73, %v199
    %201 = vmatprep.mubr.f32.mxu0 0.0
    %202 = vmatmul.mubr.f32.gmra.mrb[0].mxu0 %v96
    %v203 = vpop.f32.mrb[0].mxu0
    %v204 = vadd.f32 %v69, %v203
    %v205 = vpop.f32.mrb[0].mxu0
    %v206 = vadd.f32 %v73, %v205
    %207 = vmatprep.mubr.f32.mxu0 0.0
    %208 = vmatmul.mubr.f32.gmra.mrb[0].mxu0 %v99
    %v209 = vpop.f32.mrb[0].mxu0
    %v210 = vadd.f32 %v69, %v209
    %v211 = vpop.f32.mrb[0].mxu0
    %v212 = vadd.f32 %v73, %v211
    %213 = vdwg.mxu0
    %v214 = vld [vmem:[#allocation5] sm:$0xff]
    %v215 = vld [vmem:[#allocation5 + $0x8] sm:$0xff]
    %v216 = vld [vmem:[#allocation5 + $0x10] sm:$0xff]
    %v217 = vld [vmem:[#allocation5 + $0x18] sm:$0xff]
    %v218 = vld [vmem:[#allocation5 + $0x20] sm:$0xff]
    %v219 = vld [vmem:[#allocation5 + $0x28] sm:$0xff]
    %v220 = vld [vmem:[#allocation5 + $0x30] sm:$0xff]
    %v221 = vld [vmem:[#allocation5 + $0x38] sm:$0xff]
    %v222 = vld [vmem:[#allocation5 + $0x40] sm:$0xff]
    %v223 = vld [vmem:[#allocation5 + $0x48] sm:$0xff]
    %v224 = vld [vmem:[#allocation5 + $0x50] sm:$0xff]
    %v225 = vld [vmem:[#allocation5 + $0x58] sm:$0xff]
    %v226 = vld [vmem:[#allocation5 + $0x60] sm:$0xff]
    %v227 = vld [vmem:[#allocation5 + $0x68] sm:$0xff]
    %v228 = vld [vmem:[#allocation5 + $0x70] sm:$0xff]
    %v229 = vld [vmem:[#allocation5 + $0x78] sm:$0xff]
    %vm230 = vcmask 523264
    %v232 = vsel %vm230, 0.0, 0
    %234 = vmatprep.subr.mxu0 %v215
    %235 = vmatpush1.msra.mxu0 %v214
    %236 = vmatprep.subr.mxu0 %v217
    %237 = vmatpush1.msra.mxu0 %v216
    %238 = vmatprep.subr.mxu0 %v219
    %239 = vmatpush1.msra.mxu0 %v218
    %240 = vmatprep.subr.mxu0 %v221
    %241 = vmatpush1.msra.mxu0 %v220
    %242 = vmatprep.subr.mxu0 %v223
    %243 = vmatpush1.msra.mxu0 %v222
    %244 = vmatprep.subr.mxu0 %v225
    %245 = vmatpush1.msra.mxu0 %v224
    %246 = vmatprep.subr.mxu0 %v227
    %247 = vmatpush1.msra.mxu0 %v226
    %248 = vmatprep.subr.mxu0 %v229
    %249 = vmatpush1.msra.mxu0 %v228
    %250 = vmatprep.subr.mxu0 0.0
    %251 = vmatpush1.msra.mxu0 0.0
    %252 = vmatprep.subr.mxu0 0.0
    %253 = vmatpush1.msra.mxu0 0.0
    %254 = vmatprep.subr.mxu0 0.0
    %255 = vmatpush1.msra.mxu0 0.0
    %256 = vmatprep.subr.mxu0 0.0
    %257 = vmatpush1.msra.mxu0 0.0
    %258 = vmatprep.subr.mxu0 0.0
    %259 = vmatpush1.msra.mxu0 0.0
    %260 = vmatprep.subr.mxu0 0.0
    %261 = vmatpush1.msra.mxu0 0.0
    %262 = vmatprep.subr.mxu0 0.0
    %263 = vmatpush1.msra.mxu0 0.0
    %264 = vmatprep.subr.mxu0 0.0
    %265 = vmatpush1.msra.mxu0 0.0
    %266 = vmatprep.subr.mxu0 0.0
    %267 = vmatpush1.msra.mxu0 0.0
    %268 = vmatprep.subr.mxu0 0.0
    %269 = vmatpush1.msra.mxu0 0.0
    %270 = vmatprep.subr.mxu0 0.0
    %271 = vmatpush1.msra.mxu0 0.0
    %272 = vmatprep.subr.mxu0 0.0
    %273 = vmatpush1.msra.mxu0 0.0
    %274 = vmatprep.subr.mxu0 0.0
    %275 = vmatpush1.msra.mxu0 0.0
    %276 = vmatprep.subr.mxu0 0.0
    %277 = vmatpush1.msra.mxu0 0.0
    %278 = vmatprep.subr.mxu0 0.0
    %279 = vmatpush1.msra.mxu0 0.0
    %280 = vmatprep.subr.mxu0 0.0
    %281 = vmatpush1.msra.mxu0 0.0
    %282 = vmatprep.subr.mxu0 0.0
    %283 = vmatpush1.msra.mxu0 0.0
    %284 = vmatprep.subr.mxu0 0.0
    %285 = vmatpush1.msra.mxu0 0.0
    %286 = vmatprep.subr.mxu0 0.0
    %287 = vmatpush1.msra.mxu0 0.0
    %288 = vmatprep.subr.mxu0 0.0
    %289 = vmatpush1.msra.mxu0 0.0
    %290 = vmatprep.subr.mxu0 0.0
    %291 = vmatpush1.msra.mxu0 0.0
    %292 = vmatprep.subr.mxu0 0.0
    %293 = vmatpush1.msra.mxu0 0.0
    %294 = vmatprep.subr.mxu0 0.0
    %295 = vmatpush1.msra.mxu0 0.0
    %296 = vmatprep.subr.mxu0 0.0
    %297 = vmatpush1.msra.mxu0 0.0
    %298 = vmatprep.mubr.f32.mxu0 0.0
    %299 = vmatmul.mubr.f32.gmra.mrb[0].mxu0 %v232
    %v300 = vpop.f32.mrb[0].mxu0
    %v301 = vadd.f32 0.0, %v300
    %v302 = vpop.f32.mrb[0].mxu0
    %v303 = vadd.f32 0.0, %v302
    %304 = vdwg.mxu0
    %v305 = vadd.f32 %v168, %v301
    %v306 = vadd.f32 %v170, %v303
    %v307 = vxor.u32 %v305, 2147483648
    %v308 = vmul.f32 %v307, 1.442695
    %v309 = vpow.pop %v308
    %v310 = vadd.f32 %v309, 1.0
    %v311 = vrcp.pop %v310
    %v312 = vmul.f32 1.0, %v311
    %v313 = vtanh.pop %v306
    %v314 = vxor.u32 %v306, 2147483648
    %v315 = vmul.f32 %v314, 1.442695
    %v316 = vpow.pop %v315
    %v317 = vadd.f32 %v316, 1.0
    %v318 = vrcp.pop %v317
    %v319 = vmul.f32 1.0, %v318
    %v320 = vmul.f32 %v312, 0.0
    %v321 = vmul.f32 %v312, %v313
    %323 = vrot.lane.b32.xlu0 %v321, 64
    %v324 = vpop.permute.xlu0 %323
    %v326 = vadd.f32 %v320, %v324
    %v327 = vtanh.pop %v326
    %v328 = vmul.f32 %v319, %v327
    %330 = vrot.lane.b32.xlu0 %v328, 64
    %v331 = vpop.permute.xlu0 %330
    %v332 = vsel %vm230, %v331, 0
    %334 = vmatprep.subr.mxu0 %v215
    %335 = vmatpush1.msra.mxu0 %v214
    %336 = vmatprep.subr.mxu0 %v217
    %337 = vmatpush1.msra.mxu0 %v216
    %338 = vmatprep.subr.mxu0 %v219
    %339 = vmatpush1.msra.mxu0 %v218
    %340 = vmatprep.subr.mxu0 %v221
    %341 = vmatpush1.msra.mxu0 %v220
    %342 = vmatprep.subr.mxu0 %v223
    %343 = vmatpush1.msra.mxu0 %v222
    %344 = vmatprep.subr.mxu0 %v225
    %345 = vmatpush1.msra.mxu0 %v224
    %346 = vmatprep.subr.mxu0 %v227
    %347 = vmatpush1.msra.mxu0 %v226
    %348 = vmatprep.subr.mxu0 %v229
    %349 = vmatpush1.msra.mxu0 %v228
    %350 = vmatprep.subr.mxu0 0.0
    %351 = vmatpush1.msra.mxu0 0.0
    %352 = vmatprep.subr.mxu0 0.0
    %353 = vmatpush1.msra.mxu0 0.0
    %354 = vmatprep.subr.mxu0 0.0
    %355 = vmatpush1.msra.mxu0 0.0
    %356 = vmatprep.subr.mxu0 0.0
    %357 = vmatpush1.msra.mxu0 0.0
    %358 = vmatprep.subr.mxu0 0.0
    %359 = vmatpush1.msra.mxu0 0.0
    %360 = vmatprep.subr.mxu0 0.0
    %361 = vmatpush1.msra.mxu0 0.0
    %362 = vmatprep.subr.mxu0 0.0
    %363 = vmatpush1.msra.mxu0 0.0
    %364 = vmatprep.subr.mxu0 0.0
    %365 = vmatpush1.msra.mxu0 0.0
    %366 = vmatprep.subr.mxu0 0.0
    %367 = vmatpush1.msra.mxu0 0.0
    %368 = vmatprep.subr.mxu0 0.0
    %369 = vmatpush1.msra.mxu0 0.0
    %370 = vmatprep.subr.mxu0 0.0
    %371 = vmatpush1.msra.mxu0 0.0
    %372 = vmatprep.subr.mxu0 0.0
    %373 = vmatpush1.msra.mxu0 0.0
    %374 = vmatprep.subr.mxu0 0.0
    %375 = vmatpush1.msra.mxu0 0.0
    %376 = vmatprep.subr.mxu0 0.0
    %377 = vmatpush1.msra.mxu0 0.0
    %378 = vmatprep.subr.mxu0 0.0
    %379 = vmatpush1.msra.mxu0 0.0
    %380 = vmatprep.subr.mxu0 0.0
    %381 = vmatpush1.msra.mxu0 0.0
    %382 = vmatprep.subr.mxu0 0.0
    %383 = vmatpush1.msra.mxu0 0.0
    %384 = vmatprep.subr.mxu0 0.0
    %385 = vmatpush1.msra.mxu0 0.0
    %386 = vmatprep.subr.mxu0 0.0
    %387 = vmatpush1.msra.mxu0 0.0
    %388 = vmatprep.subr.mxu0 0.0
    %389 = vmatpush1.msra.mxu0 0.0
    %390 = vmatprep.subr.mxu0 0.0
    %391 = vmatpush1.msra.mxu0 0.0
    %392 = vmatprep.subr.mxu0 0.0
    %393 = vmatpush1.msra.mxu0 0.0
    %394 = vmatprep.subr.mxu0 0.0
    %395 = vmatpush1.msra.mxu0 0.0
    %396 = vmatprep.subr.mxu0 0.0
    %397 = vmatpush1.msra.mxu0 0.0
    %398 = vmatprep.mubr.f32.mxu0 0.0
    %399 = vmatmul.mubr.f32.gmra.mrb[0].mxu0 %v332
    %v400 = vpop.f32.mrb[0].mxu0
    %v401 = vadd.f32 0.0, %v400
    %v402 = vpop.f32.mrb[0].mxu0
    %v403 = vadd.f32 0.0, %v402
    %404 = vdwg.mxu0
    %v405 = vadd.f32 %v174, %v401
    %v406 = vadd.f32 %v176, %v403
    %v407 = vxor.u32 %v405, 2147483648
    %v408 = vmul.f32 %v407, 1.442695
    %v409 = vpow.pop %v408
    %v410 = vadd.f32 %v409, 1.0
    %v411 = vrcp.pop %v410
    %v412 = vmul.f32 1.0, %v411
    %v413 = vtanh.pop %v406
    %v414 = vxor.u32 %v406, 2147483648
    %v415 = vmul.f32 %v414, 1.442695
    %v416 = vpow.pop %v415
    %v417 = vadd.f32 %v416, 1.0
    %v418 = vrcp.pop %v417
    %v419 = vmul.f32 1.0, %v418
    %v420 = vmul.f32 %v412, %v326
    %v421 = vmul.f32 %v412, %v413
    %423 = vrot.lane.b32.xlu0 %v421, 64
    %v424 = vpop.permute.xlu0 %423
    %v426 = vadd.f32 %v420, %v424
    %v427 = vtanh.pop %v426
    %v428 = vmul.f32 %v419, %v427
    %430 = vrot.lane.b32.xlu0 %v428, 64
    %v431 = vpop.permute.xlu0 %430
    %v432 = vsel %vm230, %v431, 0
    %434 = vmatprep.subr.mxu0 %v215
    %435 = vmatpush1.msra.mxu0 %v214
    %436 = vmatprep.subr.mxu0 %v217
    %437 = vmatpush1.msra.mxu0 %v216
    %438 = vmatprep.subr.mxu0 %v219
    %439 = vmatpush1.msra.mxu0 %v218
    %440 = vmatprep.subr.mxu0 %v221
    %441 = vmatpush1.msra.mxu0 %v220
    %442 = vmatprep.subr.mxu0 %v223
    %443 = vmatpush1.msra.mxu0 %v222
    %444 = vmatprep.subr.mxu0 %v225
    %445 = vmatpush1.msra.mxu0 %v224
    %446 = vmatprep.subr.mxu0 %v227
    %447 = vmatpush1.msra.mxu0 %v226
    %448 = vmatprep.subr.mxu0 %v229
    %449 = vmatpush1.msra.mxu0 %v228
    %450 = vmatprep.subr.mxu0 0.0
    %451 = vmatpush1.msra.mxu0 0.0
    %452 = vmatprep.subr.mxu0 0.0
    %453 = vmatpush1.msra.mxu0 0.0
    %454 = vmatprep.subr.mxu0 0.0
    %455 = vmatpush1.msra.mxu0 0.0
    %456 = vmatprep.subr.mxu0 0.0
    %457 = vmatpush1.msra.mxu0 0.0
    %458 = vmatprep.subr.mxu0 0.0
    %459 = vmatpush1.msra.mxu0 0.0
    %460 = vmatprep.subr.mxu0 0.0
    %461 = vmatpush1.msra.mxu0 0.0
    %462 = vmatprep.subr.mxu0 0.0
    %463 = vmatpush1.msra.mxu0 0.0
    %464 = vmatprep.subr.mxu0 0.0
    %465 = vmatpush1.msra.mxu0 0.0
    %466 = vmatprep.subr.mxu0 0.0
    %467 = vmatpush1.msra.mxu0 0.0
    %468 = vmatprep.subr.mxu0 0.0
    %469 = vmatpush1.msra.mxu0 0.0
    %470 = vmatprep.subr.mxu0 0.0
    %471 = vmatpush1.msra.mxu0 0.0
    %472 = vmatprep.subr.mxu0 0.0
    %473 = vmatpush1.msra.mxu0 0.0
    %474 = vmatprep.subr.mxu0 0.0
    %475 = vmatpush1.msra.mxu0 0.0
    %476 = vmatprep.subr.mxu0 0.0
    %477 = vmatpush1.msra.mxu0 0.0
    %478 = vmatprep.subr.mxu0 0.0
    %479 = vmatpush1.msra.mxu0 0.0
    %480 = vmatprep.subr.mxu0 0.0
    %481 = vmatpush1.msra.mxu0 0.0
    %482 = vmatprep.subr.mxu0 0.0
    %483 = vmatpush1.msra.mxu0 0.0
    %484 = vmatprep.subr.mxu0 0.0
    %485 = vmatpush1.msra.mxu0 0.0
    %486 = vmatprep.subr.mxu0 0.0
    %487 = vmatpush1.msra.mxu0 0.0
    %488 = vmatprep.subr.mxu0 0.0
    %489 = vmatpush1.msra.mxu0 0.0
    %490 = vmatprep.subr.mxu0 0.0
    %491 = vmatpush1.msra.mxu0 0.0
    %492 = vmatprep.subr.mxu0 0.0
    %493 = vmatpush1.msra.mxu0 0.0
    %494 = vmatprep.subr.mxu0 0.0
    %495 = vmatpush1.msra.mxu0 0.0
    %496 = vmatprep.subr.mxu0 0.0
    %497 = vmatpush1.msra.mxu0 0.0
    %498 = vmatprep.mubr.f32.mxu0 0.0
    %499 = vmatmul.mubr.f32.gmra.mrb[0].mxu0 %v432
    %v500 = vpop.f32.mrb[0].mxu0
    %v501 = vadd.f32 0.0, %v500
    %v502 = vpop.f32.mrb[0].mxu0
    %v503 = vadd.f32 0.0, %v502
    %504 = vdwg.mxu0
    %v505 = vadd.f32 %v180, %v501
    %v506 = vadd.f32 %v182, %v503
    %v507 = vxor.u32 %v505, 2147483648
    %v508 = vmul.f32 %v507, 1.442695
    %v509 = vpow.pop %v508
    %v510 = vadd.f32 %v509, 1.0
    %v511 = vrcp.pop %v510
    %v512 = vmul.f32 1.0, %v511
    %v513 = vtanh.pop %v506
    %v514 = vxor.u32 %v506, 2147483648
    %v515 = vmul.f32 %v514, 1.442695
    %v516 = vpow.pop %v515
    %v517 = vadd.f32 %v516, 1.0
    %v518 = vrcp.pop %v517
    %v519 = vmul.f32 1.0, %v518
    %v520 = vmul.f32 %v512, %v426
    %v521 = vmul.f32 %v512, %v513
    %523 = vrot.lane.b32.xlu0 %v521, 64
    %v524 = vpop.permute.xlu0 %523
    %v526 = vadd.f32 %v520, %v524
    %v527 = vtanh.pop %v526
    %v528 = vmul.f32 %v519, %v527
    %530 = vrot.lane.b32.xlu0 %v528, 64
    %v531 = vpop.permute.xlu0 %530
    %v532 = vsel %vm230, %v531, 0
    %534 = vmatprep.subr.mxu0 %v215
    %535 = vmatpush1.msra.mxu0 %v214
    %536 = vmatprep.subr.mxu0 %v217
    %537 = vmatpush1.msra.mxu0 %v216
    %538 = vmatprep.subr.mxu0 %v219
    %539 = vmatpush1.msra.mxu0 %v218
    %540 = vmatprep.subr.mxu0 %v221
    %541 = vmatpush1.msra.mxu0 %v220
    %542 = vmatprep.subr.mxu0 %v223
    %543 = vmatpush1.msra.mxu0 %v222
    %544 = vmatprep.subr.mxu0 %v225
    %545 = vmatpush1.msra.mxu0 %v224
    %546 = vmatprep.subr.mxu0 %v227
    %547 = vmatpush1.msra.mxu0 %v226
    %548 = vmatprep.subr.mxu0 %v229
    %549 = vmatpush1.msra.mxu0 %v228
    %550 = vmatprep.subr.mxu0 0.0
    %551 = vmatpush1.msra.mxu0 0.0
    %552 = vmatprep.subr.mxu0 0.0
    %553 = vmatpush1.msra.mxu0 0.0
    %554 = vmatprep.subr.mxu0 0.0
    %555 = vmatpush1.msra.mxu0 0.0
    %556 = vmatprep.subr.mxu0 0.0
    %557 = vmatpush1.msra.mxu0 0.0
    %558 = vmatprep.subr.mxu0 0.0
    %559 = vmatpush1.msra.mxu0 0.0
    %560 = vmatprep.subr.mxu0 0.0
    %561 = vmatpush1.msra.mxu0 0.0
    %562 = vmatprep.subr.mxu0 0.0
    %563 = vmatpush1.msra.mxu0 0.0
    %564 = vmatprep.subr.mxu0 0.0
    %565 = vmatpush1.msra.mxu0 0.0
    %566 = vmatprep.subr.mxu0 0.0
    %567 = vmatpush1.msra.mxu0 0.0
    %568 = vmatprep.subr.mxu0 0.0
    %569 = vmatpush1.msra.mxu0 0.0
    %570 = vmatprep.subr.mxu0 0.0
    %571 = vmatpush1.msra.mxu0 0.0
    %572 = vmatprep.subr.mxu0 0.0
    %573 = vmatpush1.msra.mxu0 0.0
    %574 = vmatprep.subr.mxu0 0.0
    %575 = vmatpush1.msra.mxu0 0.0
    %576 = vmatprep.subr.mxu0 0.0
    %577 = vmatpush1.msra.mxu0 0.0
    %578 = vmatprep.subr.mxu0 0.0
    %579 = vmatpush1.msra.mxu0 0.0
    %580 = vmatprep.subr.mxu0 0.0
    %581 = vmatpush1.msra.mxu0 0.0
    %582 = vmatprep.subr.mxu0 0.0
    %583 = vmatpush1.msra.mxu0 0.0
    %584 = vmatprep.subr.mxu0 0.0
    %585 = vmatpush1.msra.mxu0 0.0
    %586 = vmatprep.subr.mxu0 0.0
    %587 = vmatpush1.msra.mxu0 0.0
    %588 = vmatprep.subr.mxu0 0.0
    %589 = vmatpush1.msra.mxu0 0.0
    %590 = vmatprep.subr.mxu0 0.0
    %591 = vmatpush1.msra.mxu0 0.0
    %592 = vmatprep.subr.mxu0 0.0
    %593 = vmatpush1.msra.mxu0 0.0
    %594 = vmatprep.subr.mxu0 0.0
    %595 = vmatpush1.msra.mxu0 0.0
    %596 = vmatprep.subr.mxu0 0.0
    %597 = vmatpush1.msra.mxu0 0.0
    %598 = vmatprep.mubr.f32.mxu0 0.0
    %599 = vmatmul.mubr.f32.gmra.mrb[0].mxu0 %v532
    %v600 = vpop.f32.mrb[0].mxu0
    %v601 = vadd.f32 0.0, %v600
    %v602 = vpop.f32.mrb[0].mxu0
    %v603 = vadd.f32 0.0, %v602
    %604 = vdwg.mxu0
    %v605 = vadd.f32 %v186, %v601
    %v606 = vadd.f32 %v188, %v603
    %v607 = vxor.u32 %v605, 2147483648
    %v608 = vmul.f32 %v607, 1.442695
    %v609 = vpow.pop %v608
    %v610 = vadd.f32 %v609, 1.0
    %v611 = vrcp.pop %v610
    %v612 = vmul.f32 1.0, %v611
    %v613 = vtanh.pop %v606
    %v614 = vxor.u32 %v606, 2147483648
    %v615 = vmul.f32 %v614, 1.442695
    %v616 = vpow.pop %v615
    %v617 = vadd.f32 %v616, 1.0
    %v618 = vrcp.pop %v617
    %v619 = vmul.f32 1.0, %v618
    %v620 = vmul.f32 %v612, %v526
    %v621 = vmul.f32 %v612, %v613
    %623 = vrot.lane.b32.xlu0 %v621, 64
    %v624 = vpop.permute.xlu0 %623
    %v626 = vadd.f32 %v620, %v624
    %v627 = vtanh.pop %v626
    %v628 = vmul.f32 %v619, %v627
    %630 = vrot.lane.b32.xlu0 %v628, 64
    %v631 = vpop.permute.xlu0 %630
    %v632 = vsel %vm230, %v631, 0
    %634 = vmatprep.subr.mxu0 %v215
    %635 = vmatpush1.msra.mxu0 %v214
    %636 = vmatprep.subr.mxu0 %v217
    %637 = vmatpush1.msra.mxu0 %v216
    %638 = vmatprep.subr.mxu0 %v219
    %639 = vmatpush1.msra.mxu0 %v218
    %640 = vmatprep.subr.mxu0 %v221
    %641 = vmatpush1.msra.mxu0 %v220
    %642 = vmatprep.subr.mxu0 %v223
    %643 = vmatpush1.msra.mxu0 %v222
    %644 = vmatprep.subr.mxu0 %v225
    %645 = vmatpush1.msra.mxu0 %v224
    %646 = vmatprep.subr.mxu0 %v227
    %647 = vmatpush1.msra.mxu0 %v226
    %648 = vmatprep.subr.mxu0 %v229
    %649 = vmatpush1.msra.mxu0 %v228
    %650 = vmatprep.subr.mxu0 0.0
    %651 = vmatpush1.msra.mxu0 0.0
    %652 = vmatprep.subr.mxu0 0.0
    %653 = vmatpush1.msra.mxu0 0.0
    %654 = vmatprep.subr.mxu0 0.0
    %655 = vmatpush1.msra.mxu0 0.0
    %656 = vmatprep.subr.mxu0 0.0
    %657 = vmatpush1.msra.mxu0 0.0
    %658 = vmatprep.subr.mxu0 0.0
    %659 = vmatpush1.msra.mxu0 0.0
    %660 = vmatprep.subr.mxu0 0.0
    %661 = vmatpush1.msra.mxu0 0.0
    %662 = vmatprep.subr.mxu0 0.0
    %663 = vmatpush1.msra.mxu0 0.0
    %664 = vmatprep.subr.mxu0 0.0
    %665 = vmatpush1.msra.mxu0 0.0
    %666 = vmatprep.subr.mxu0 0.0
    %667 = vmatpush1.msra.mxu0 0.0
    %668 = vmatprep.subr.mxu0 0.0
    %669 = vmatpush1.msra.mxu0 0.0
    %670 = vmatprep.subr.mxu0 0.0
    %671 = vmatpush1.msra.mxu0 0.0
    %672 = vmatprep.subr.mxu0 0.0
    %673 = vmatpush1.msra.mxu0 0.0
    %674 = vmatprep.subr.mxu0 0.0
    %675 = vmatpush1.msra.mxu0 0.0
    %676 = vmatprep.subr.mxu0 0.0
    %677 = vmatpush1.msra.mxu0 0.0
    %678 = vmatprep.subr.mxu0 0.0
    %679 = vmatpush1.msra.mxu0 0.0
    %680 = vmatprep.subr.mxu0 0.0
    %681 = vmatpush1.msra.mxu0 0.0
    %682 = vmatprep.subr.mxu0 0.0
    %683 = vmatpush1.msra.mxu0 0.0
    %684 = vmatprep.subr.mxu0 0.0
    %685 = vmatpush1.msra.mxu0 0.0
    %686 = vmatprep.subr.mxu0 0.0
    %687 = vmatpush1.msra.mxu0 0.0
    %688 = vmatprep.subr.mxu0 0.0
    %689 = vmatpush1.msra.mxu0 0.0
    %690 = vmatprep.subr.mxu0 0.0
    %691 = vmatpush1.msra.mxu0 0.0
    %692 = vmatprep.subr.mxu0 0.0
    %693 = vmatpush1.msra.mxu0 0.0
    %694 = vmatprep.subr.mxu0 0.0
    %695 = vmatpush1.msra.mxu0 0.0
    %696 = vmatprep.subr.mxu0 0.0
    %697 = vmatpush1.msra.mxu0 0.0
    %698 = vmatprep.mubr.f32.mxu0 0.0
    %699 = vmatmul.mubr.f32.gmra.mrb[0].mxu0 %v632
    %v700 = vpop.f32.mrb[0].mxu0
    %v701 = vadd.f32 0.0, %v700
    %v702 = vpop.f32.mrb[0].mxu0
    %v703 = vadd.f32 0.0, %v702
    %704 = vdwg.mxu0
    %v705 = vadd.f32 %v192, %v701
    %v706 = vadd.f32 %v194, %v703
    %v707 = vxor.u32 %v705, 2147483648
    %v708 = vmul.f32 %v707, 1.442695
    %v709 = vpow.pop %v708
    %v710 = vadd.f32 %v709, 1.0
    %v711 = vrcp.pop %v710
    %v712 = vmul.f32 1.0, %v711
    %v713 = vtanh.pop %v706
    %v714 = vxor.u32 %v706, 2147483648
    %v715 = vmul.f32 %v714, 1.442695
    %v716 = vpow.pop %v715
    %v717 = vadd.f32 %v716, 1.0
    %v718 = vrcp.pop %v717
    %v719 = vmul.f32 1.0, %v718
    %v720 = vmul.f32 %v712, %v626
    %v721 = vmul.f32 %v712, %v713
    %723 = vrot.lane.b32.xlu0 %v721, 64
    %v724 = vpop.permute.xlu0 %723
    %v726 = vadd.f32 %v720, %v724
    %v727 = vtanh.pop %v726
    %v728 = vmul.f32 %v719, %v727
    %730 = vrot.lane.b32.xlu0 %v728, 64
    %v731 = vpop.permute.xlu0 %730
    %v732 = vsel %vm230, %v731, 0
    %734 = vmatprep.subr.mxu0 %v215
    %735 = vmatpush1.msra.mxu0 %v214
    %736 = vmatprep.subr.mxu0 %v217
    %737 = vmatpush1.msra.mxu0 %v216
    %738 = vmatprep.subr.mxu0 %v219
    %739 = vmatpush1.msra.mxu0 %v218
    %740 = vmatprep.subr.mxu0 %v221
    %741 = vmatpush1.msra.mxu0 %v220
    %742 = vmatprep.subr.mxu0 %v223
    %743 = vmatpush1.msra.mxu0 %v222
    %744 = vmatprep.subr.mxu0 %v225
    %745 = vmatpush1.msra.mxu0 %v224
    %746 = vmatprep.subr.mxu0 %v227
    %747 = vmatpush1.msra.mxu0 %v226
    %748 = vmatprep.subr.mxu0 %v229
    %749 = vmatpush1.msra.mxu0 %v228
    %750 = vmatprep.subr.mxu0 0.0
    %751 = vmatpush1.msra.mxu0 0.0
    %752 = vmatprep.subr.mxu0 0.0
    %753 = vmatpush1.msra.mxu0 0.0
    %754 = vmatprep.subr.mxu0 0.0
    %755 = vmatpush1.msra.mxu0 0.0
    %756 = vmatprep.subr.mxu0 0.0
    %757 = vmatpush1.msra.mxu0 0.0
    %758 = vmatprep.subr.mxu0 0.0
    %759 = vmatpush1.msra.mxu0 0.0
    %760 = vmatprep.subr.mxu0 0.0
    %761 = vmatpush1.msra.mxu0 0.0
    %762 = vmatprep.subr.mxu0 0.0
    %763 = vmatpush1.msra.mxu0 0.0
    %764 = vmatprep.subr.mxu0 0.0
    %765 = vmatpush1.msra.mxu0 0.0
    %766 = vmatprep.subr.mxu0 0.0
    %767 = vmatpush1.msra.mxu0 0.0
    %768 = vmatprep.subr.mxu0 0.0
    %769 = vmatpush1.msra.mxu0 0.0
    %770 = vmatprep.subr.mxu0 0.0
    %771 = vmatpush1.msra.mxu0 0.0
    %772 = vmatprep.subr.mxu0 0.0
    %773 = vmatpush1.msra.mxu0 0.0
    %774 = vmatprep.subr.mxu0 0.0
    %775 = vmatpush1.msra.mxu0 0.0
    %776 = vmatprep.subr.mxu0 0.0
    %777 = vmatpush1.msra.mxu0 0.0
    %778 = vmatprep.subr.mxu0 0.0
    %779 = vmatpush1.msra.mxu0 0.0
    %780 = vmatprep.subr.mxu0 0.0
    %781 = vmatpush1.msra.mxu0 0.0
    %782 = vmatprep.subr.mxu0 0.0
    %783 = vmatpush1.msra.mxu0 0.0
    %784 = vmatprep.subr.mxu0 0.0
    %785 = vmatpush1.msra.mxu0 0.0
    %786 = vmatprep.subr.mxu0 0.0
    %787 = vmatpush1.msra.mxu0 0.0
    %788 = vmatprep.subr.mxu0 0.0
    %789 = vmatpush1.msra.mxu0 0.0
    %790 = vmatprep.subr.mxu0 0.0
    %791 = vmatpush1.msra.mxu0 0.0
    %792 = vmatprep.subr.mxu0 0.0
    %793 = vmatpush1.msra.mxu0 0.0
    %794 = vmatprep.subr.mxu0 0.0
    %795 = vmatpush1.msra.mxu0 0.0
    %796 = vmatprep.subr.mxu0 0.0
    %797 = vmatpush1.msra.mxu0 0.0
    %798 = vmatprep.mubr.f32.mxu0 0.0
    %799 = vmatmul.mubr.f32.gmra.mrb[0].mxu0 %v732
    %v800 = vpop.f32.mrb[0].mxu0
    %v801 = vadd.f32 0.0, %v800
    %v802 = vpop.f32.mrb[0].mxu0
    %v803 = vadd.f32 0.0, %v802
    %804 = vdwg.mxu0
    %v805 = vadd.f32 %v198, %v801
    %v806 = vadd.f32 %v200, %v803
    %v807 = vxor.u32 %v805, 2147483648
    %v808 = vmul.f32 %v807, 1.442695
    %v809 = vpow.pop %v808
    %v810 = vadd.f32 %v809, 1.0
    %v811 = vrcp.pop %v810
    %v812 = vmul.f32 1.0, %v811
    %v813 = vtanh.pop %v806
    %v814 = vxor.u32 %v806, 2147483648
    %v815 = vmul.f32 %v814, 1.442695
    %v816 = vpow.pop %v815
    %v817 = vadd.f32 %v816, 1.0
    %v818 = vrcp.pop %v817
    %v819 = vmul.f32 1.0, %v818
    %v820 = vmul.f32 %v812, %v726
    %v821 = vmul.f32 %v812, %v813
    %823 = vrot.lane.b32.xlu0 %v821, 64
    %v824 = vpop.permute.xlu0 %823
    %v826 = vadd.f32 %v820, %v824
    %v827 = vtanh.pop %v826
    %v828 = vmul.f32 %v819, %v827
    %830 = vrot.lane.b32.xlu0 %v828, 64
    %v831 = vpop.permute.xlu0 %830
    %v832 = vsel %vm230, %v831, 0
    %834 = vmatprep.subr.mxu0 %v215
    %835 = vmatpush1.msra.mxu0 %v214
    %836 = vmatprep.subr.mxu0 %v217
    %837 = vmatpush1.msra.mxu0 %v216
    %838 = vmatprep.subr.mxu0 %v219
    %839 = vmatpush1.msra.mxu0 %v218
    %840 = vmatprep.subr.mxu0 %v221
    %841 = vmatpush1.msra.mxu0 %v220
    %842 = vmatprep.subr.mxu0 %v223
    %843 = vmatpush1.msra.mxu0 %v222
    %844 = vmatprep.subr.mxu0 %v225
    %845 = vmatpush1.msra.mxu0 %v224
    %846 = vmatprep.subr.mxu0 %v227
    %847 = vmatpush1.msra.mxu0 %v226
    %848 = vmatprep.subr.mxu0 %v229
    %849 = vmatpush1.msra.mxu0 %v228
    %850 = vmatprep.subr.mxu0 0.0
    %851 = vmatpush1.msra.mxu0 0.0
    %852 = vmatprep.subr.mxu0 0.0
    %853 = vmatpush1.msra.mxu0 0.0
    %854 = vmatprep.subr.mxu0 0.0
    %855 = vmatpush1.msra.mxu0 0.0
    %856 = vmatprep.subr.mxu0 0.0
    %857 = vmatpush1.msra.mxu0 0.0
    %858 = vmatprep.subr.mxu0 0.0
    %859 = vmatpush1.msra.mxu0 0.0
    %860 = vmatprep.subr.mxu0 0.0
    %861 = vmatpush1.msra.mxu0 0.0
    %862 = vmatprep.subr.mxu0 0.0
    %863 = vmatpush1.msra.mxu0 0.0
    %864 = vmatprep.subr.mxu0 0.0
    %865 = vmatpush1.msra.mxu0 0.0
    %866 = vmatprep.subr.mxu0 0.0
    %867 = vmatpush1.msra.mxu0 0.0
    %868 = vmatprep.subr.mxu0 0.0
    %869 = vmatpush1.msra.mxu0 0.0
    %870 = vmatprep.subr.mxu0 0.0
    %871 = vmatpush1.msra.mxu0 0.0
    %872 = vmatprep.subr.mxu0 0.0
    %873 = vmatpush1.msra.mxu0 0.0
    %874 = vmatprep.subr.mxu0 0.0
    %875 = vmatpush1.msra.mxu0 0.0
    %876 = vmatprep.subr.mxu0 0.0
    %877 = vmatpush1.msra.mxu0 0.0
    %878 = vmatprep.subr.mxu0 0.0
    %879 = vmatpush1.msra.mxu0 0.0
    %880 = vmatprep.subr.mxu0 0.0
    %881 = vmatpush1.msra.mxu0 0.0
    %882 = vmatprep.subr.mxu0 0.0
    %883 = vmatpush1.msra.mxu0 0.0
    %884 = vmatprep.subr.mxu0 0.0
    %885 = vmatpush1.msra.mxu0 0.0
    %886 = vmatprep.subr.mxu0 0.0
    %887 = vmatpush1.msra.mxu0 0.0
    %888 = vmatprep.subr.mxu0 0.0
    %889 = vmatpush1.msra.mxu0 0.0
    %890 = vmatprep.subr.mxu0 0.0
    %891 = vmatpush1.msra.mxu0 0.0
    %892 = vmatprep.subr.mxu0 0.0
    %893 = vmatpush1.msra.mxu0 0.0
    %894 = vmatprep.subr.mxu0 0.0
    %895 = vmatpush1.msra.mxu0 0.0
    %896 = vmatprep.subr.mxu0 0.0
    %897 = vmatpush1.msra.mxu0 0.0
    %898 = vmatprep.mubr.f32.mxu0 0.0
    %899 = vmatmul.mubr.f32.gmra.mrb[0].mxu0 %v832
    %v900 = vpop.f32.mrb[0].mxu0
    %v901 = vadd.f32 0.0, %v900
    %v902 = vpop.f32.mrb[0].mxu0
    %v903 = vadd.f32 0.0, %v902
    %904 = vdwg.mxu0
    %v905 = vadd.f32 %v204, %v901
    %v906 = vadd.f32 %v206, %v903
    %v907 = vxor.u32 %v905, 2147483648
    %v908 = vmul.f32 %v907, 1.442695
    %v909 = vpow.pop %v908
    %v910 = vadd.f32 %v909, 1.0
    %v911 = vrcp.pop %v910
    %v912 = vmul.f32 1.0, %v911
    %v913 = vtanh.pop %v906
    %v914 = vxor.u32 %v906, 2147483648
    %v915 = vmul.f32 %v914, 1.442695
    %v916 = vpow.pop %v915
    %v917 = vadd.f32 %v916, 1.0
    %v918 = vrcp.pop %v917
    %v919 = vmul.f32 1.0, %v918
    %v920 = vmul.f32 %v912, %v826
    %v921 = vmul.f32 %v912, %v913
    %923 = vrot.lane.b32.xlu0 %v921, 64
    %v924 = vpop.permute.xlu0 %923
    %v926 = vadd.f32 %v920, %v924
    %v927 = vtanh.pop %v926
    %v928 = vmul.f32 %v919, %v927
    %930 = vrot.lane.b32.xlu0 %v928, 64
    %v931 = vpop.permute.xlu0 %930
    %v932 = vsel %vm230, %v931, 0
    %934 = vmatprep.subr.mxu0 %v215
    %935 = vmatpush1.msra.mxu0 %v214
    %936 = vmatprep.subr.mxu0 %v217
    %937 = vmatpush1.msra.mxu0 %v216
    %938 = vmatprep.subr.mxu0 %v219
    %939 = vmatpush1.msra.mxu0 %v218
    %940 = vmatprep.subr.mxu0 %v221
    %941 = vmatpush1.msra.mxu0 %v220
    %942 = vmatprep.subr.mxu0 %v223
    %943 = vmatpush1.msra.mxu0 %v222
    %944 = vmatprep.subr.mxu0 %v225
    %945 = vmatpush1.msra.mxu0 %v224
    %946 = vmatprep.subr.mxu0 %v227
    %947 = vmatpush1.msra.mxu0 %v226
    %948 = vmatprep.subr.mxu0 %v229
    %949 = vmatpush1.msra.mxu0 %v228
    %950 = vmatprep.subr.mxu0 0.0
    %951 = vmatpush1.msra.mxu0 0.0
    %952 = vmatprep.subr.mxu0 0.0
    %953 = vmatpush1.msra.mxu0 0.0
    %954 = vmatprep.subr.mxu0 0.0
    %955 = vmatpush1.msra.mxu0 0.0
    %956 = vmatprep.subr.mxu0 0.0
    %957 = vmatpush1.msra.mxu0 0.0
    %958 = vmatprep.subr.mxu0 0.0
    %959 = vmatpush1.msra.mxu0 0.0
    %960 = vmatprep.subr.mxu0 0.0
    %961 = vmatpush1.msra.mxu0 0.0
    %962 = vmatprep.subr.mxu0 0.0
    %963 = vmatpush1.msra.mxu0 0.0
    %964 = vmatprep.subr.mxu0 0.0
    %965 = vmatpush1.msra.mxu0 0.0
    %966 = vmatprep.subr.mxu0 0.0
    %967 = vmatpush1.msra.mxu0 0.0
    %968 = vmatprep.subr.mxu0 0.0
    %969 = vmatpush1.msra.mxu0 0.0
    %970 = vmatprep.subr.mxu0 0.0
    %971 = vmatpush1.msra.mxu0 0.0
    %972 = vmatprep.subr.mxu0 0.0
    %973 = vmatpush1.msra.mxu0 0.0
    %974 = vmatprep.subr.mxu0 0.0
    %975 = vmatpush1.msra.mxu0 0.0
    %976 = vmatprep.subr.mxu0 0.0
    %977 = vmatpush1.msra.mxu0 0.0
    %978 = vmatprep.subr.mxu0 0.0
    %979 = vmatpush1.msra.mxu0 0.0
    %980 = vmatprep.subr.mxu0 0.0
    %981 = vmatpush1.msra.mxu0 0.0
    %982 = vmatprep.subr.mxu0 0.0
    %983 = vmatpush1.msra.mxu0 0.0
    %984 = vmatprep.subr.mxu0 0.0
    %985 = vmatpush1.msra.mxu0 0.0
    %986 = vmatprep.subr.mxu0 0.0
    %987 = vmatpush1.msra.mxu0 0.0
    %988 = vmatprep.subr.mxu0 0.0
    %989 = vmatpush1.msra.mxu0 0.0
    %990 = vmatprep.subr.mxu0 0.0
    %991 = vmatpush1.msra.mxu0 0.0
    %992 = vmatprep.subr.mxu0 0.0
    %993 = vmatpush1.msra.mxu0 0.0
    %994 = vmatprep.subr.mxu0 0.0
    %995 = vmatpush1.msra.mxu0 0.0
    %996 = vmatprep.subr.mxu0 0.0
    %997 = vmatpush1.msra.mxu0 0.0
    %998 = vmatprep.mubr.f32.mxu0 0.0
    %999 = vmatmul.mubr.f32.gmra.mrb[0].mxu0 %v932
    %v1000 = vpop.f32.mrb[0].mxu0
    %v1001 = vadd.f32 0.0, %v1000
    %v1002 = vpop.f32.mrb[0].mxu0
    %v1003 = vadd.f32 0.0, %v1002
    %1004 = vdwg.mxu0
    %v1005 = vadd.f32 %v210, %v1001
    %v1006 = vadd.f32 %v212, %v1003
    %v1007 = vxor.u32 %v1005, 2147483648
    %v1008 = vmul.f32 %v1007, 1.442695
    %v1009 = vpow.pop %v1008
    %v1010 = vadd.f32 %v1009, 1.0
    %v1011 = vrcp.pop %v1010
    %v1012 = vmul.f32 1.0, %v1011
    %v1013 = vtanh.pop %v1006
    %v1014 = vxor.u32 %v1006, 2147483648
    %v1015 = vmul.f32 %v1014, 1.442695
    %v1016 = vpow.pop %v1015
    %v1017 = vadd.f32 %v1016, 1.0
    %v1018 = vrcp.pop %v1017
    %v1019 = vmul.f32 1.0, %v1018
    %v1020 = vmul.f32 %v1012, %v926
    %v1021 = vmul.f32 %v1012, %v1013
    %1023 = vrot.lane.b32.xlu0 %v1021, 64
    %v1024 = vpop.permute.xlu0 %1023
    %v1026 = vadd.f32 %v1020, %v1024
    %v1027 = vtanh.pop %v1026
    %v1028 = vmul.f32 %v1019, %v1027
    %v1029 = vld [vmem:[%s4] sm:$0xff]
    %v1030 = vld [vmem:[%s4 + $0x8] sm:$0xff]
    %v1031 = vld [vmem:[%s4 + $0x10] sm:$0xff]
    %v1032 = vld [vmem:[%s4 + $0x18] sm:$0xff]
    %v1033 = vld [vmem:[%s4 + $0x20] sm:$0xff]
    %v1034 = vld [vmem:[%s4 + $0x28] sm:$0xff]
    %v1035 = vld [vmem:[%s4 + $0x30] sm:$0xff]
    %v1036 = vld [vmem:[%s4 + $0x38] sm:$0xff]
    %v1037 = vld [vmem:[%s5] sm:$0x1]
    %v1039 = vlaneseq
    %v1040 = vshrl.u32 %v1039, 7
    %v1041 = vsub.s32 0, %v1040
    %v1042 = vrot.slane %v1037, %v1041
    %1045 = vrot.lane.b32.xlu0 %v1028, 64
    %v1046 = vpop.permute.xlu0 %1045
    %v1047 = vsel %vm230, %v1046, 0
    %1049 = vmatprep.subr.mxu0 0.0
    %1050 = vmatpush1.msra.mxu0 %v1029
    %1051 = vmatprep.subr.mxu0 0.0
    %1052 = vmatpush1.msra.mxu0 %v1030
    %1053 = vmatprep.subr.mxu0 0.0
    %1054 = vmatpush1.msra.mxu0 %v1031
    %1055 = vmatprep.subr.mxu0 0.0
    %1056 = vmatpush1.msra.mxu0 %v1032
    %1057 = vmatprep.subr.mxu0 0.0
    %1058 = vmatpush1.msra.mxu0 %v1033
    %1059 = vmatprep.subr.mxu0 0.0
    %1060 = vmatpush1.msra.mxu0 %v1034
    %1061 = vmatprep.subr.mxu0 0.0
    %1062 = vmatpush1.msra.mxu0 %v1035
    %1063 = vmatprep.subr.mxu0 0.0
    %1064 = vmatpush1.msra.mxu0 %v1036
    %1065 = vmatprep.subr.mxu0 0.0
    %1066 = vmatpush1.msra.mxu0 0.0
    %1067 = vmatprep.subr.mxu0 0.0
    %1068 = vmatpush1.msra.mxu0 0.0
    %1069 = vmatprep.subr.mxu0 0.0
    %1070 = vmatpush1.msra.mxu0 0.0
    %1071 = vmatprep.subr.mxu0 0.0
    %1072 = vmatpush1.msra.mxu0 0.0
    %1073 = vmatprep.subr.mxu0 0.0
    %1074 = vmatpush1.msra.mxu0 0.0
    %1075 = vmatprep.subr.mxu0 0.0
    %1076 = vmatpush1.msra.mxu0 0.0
    %1077 = vmatprep.subr.mxu0 0.0
    %1078 = vmatpush1.msra.mxu0 0.0
    %1079 = vmatprep.subr.mxu0 0.0
    %1080 = vmatpush1.msra.mxu0 0.0
    %1081 = vmatprep.subr.mxu0 0.0
    %1082 = vmatpush1.msra.mxu0 0.0
    %1083 = vmatprep.subr.mxu0 0.0
    %1084 = vmatpush1.msra.mxu0 0.0
    %1085 = vmatprep.subr.mxu0 0.0
    %1086 = vmatpush1.msra.mxu0 0.0
    %1087 = vmatprep.subr.mxu0 0.0
    %1088 = vmatpush1.msra.mxu0 0.0
    %1089 = vmatprep.subr.mxu0 0.0
    %1090 = vmatpush1.msra.mxu0 0.0
    %1091 = vmatprep.subr.mxu0 0.0
    %1092 = vmatpush1.msra.mxu0 0.0
    %1093 = vmatprep.subr.mxu0 0.0
    %1094 = vmatpush1.msra.mxu0 0.0
    %1095 = vmatprep.subr.mxu0 0.0
    %1096 = vmatpush1.msra.mxu0 0.0
    %1097 = vmatprep.subr.mxu0 0.0
    %1098 = vmatpush1.msra.mxu0 0.0
    %1099 = vmatprep.subr.mxu0 0.0
    %1100 = vmatpush1.msra.mxu0 0.0
    %1101 = vmatprep.subr.mxu0 0.0
    %1102 = vmatpush1.msra.mxu0 0.0
    %1103 = vmatprep.subr.mxu0 0.0
    %1104 = vmatpush1.msra.mxu0 0.0
    %1105 = vmatprep.subr.mxu0 0.0
    %1106 = vmatpush1.msra.mxu0 0.0
    %1107 = vmatprep.subr.mxu0 0.0
    %1108 = vmatpush1.msra.mxu0 0.0
    %1109 = vmatprep.subr.mxu0 0.0
    %1110 = vmatpush1.msra.mxu0 0.0
    %1111 = vmatprep.subr.mxu0 0.0
    %1112 = vmatpush1.msra.mxu0 0.0
    %1113 = vmatprep.mubr.f32.mxu0 0.0
    %1114 = vmatmul.mubr.f32.gmra.mrb[0].mxu0 %v1047
    %v1115 = vpop.f32.mrb[0].mxu0
    %v1116 = vadd.f32 %v1042, %v1115
    %v1117 = vpop.f32.mrb[0].mxu0
    %1118 = vdwg.mxu0
    %1119 = vst [vmem:[#allocation7] sm:$0xff] %v1116
    // Predicated region
    $region34: #{tpu_custom_call.1} parent=1 // pred_check
      _
    $region35: #{tpu_custom_call.1} parent=1 // pred_check_branch
      %1121 = sbr.rel (0) target = $region37
    $region36: #{tpu_custom_call.1} parent=1 // pred_region
      %s1123 = ssub.s32 128, 128
      %1124 = vsyncadd [#allocation4], %s1123
      %s1126 = sshll.u32 [#allocation7], 4
      %s1127 = int_to_ptr.vmem [resolvable:$true] %s1126
      %1129 = dma.vmem_to_hbm [thread:$0]  %s1127, 128, %s6, [#allocation4]
    $region37: #{tpu_custom_call.1} parent=1 // pred_fallthru
      _
    // Predicated region
    $region38: #{tpu_custom_call.1} parent=1 // pred_check
      _
    $region39: #{tpu_custom_call.1} parent=1 // pred_check_branch
      %1131 = sbr.rel (0) target = $region41
    $region40: #{tpu_custom_call.1} parent=1 // pred_region
      %1132 = dma.done [#allocation4], 128
    $region41: #{tpu_custom_call.1} parent=1 // pred_fallthru
      _
    %1133 = vsyncpa [#allocation3], 1
    %1134 = vsyncpa [#allocation6], 1
    %1135 = vsyncpa [#allocation4], 1

</llo_original>
